<compile_context>
chip_gen: v6e
topology: v6e:2x2x1
jax: 0.10.0
libtpu: 0.0.40
codegen_flags: <defaults>
</compile_context>

<pallas_src>
import functools

import jax
import jax.numpy as jnp
from jax import lax
from jax.experimental import pallas as pl
from jax.experimental.pallas import tpu as pltpu

# Shapes implied by the module: Conv2d kernels (3/4/5, 128); max_pool1d(conv1, 18)
# over conv1 length S-3+1 => S = 20, E = 128; fc1 input 48 => 3 * 16 channels.
B = 2            # batch
S = 20           # sequence length
E = 128          # embedding width (Conv2d kernel width)
C = 16           # conv output channels
K1 = 3           # conv1 kernel height (the only conv that reaches the output)
L1 = S - K1 + 1  # 18: conv1 output length
H1, H2, NCLS = 64, 64, 4

# Row layout of the packed parameter slab (f32, 64 lanes wide).  All section
# starts are multiples of 8, so every in-kernel slice is sublane-aligned.
LANES = 64
R_W1 = 0                   # conv1 taps: 3 x (128, 16)   rows [  0, 384), lanes [0,16)
R_FC1 = R_W1 + K1 * E      # fc1 split : 3 x ( 16, 64)   rows [384, 432)
R_FC2 = R_FC1 + 3 * C      # fc2       :     ( 64, 64)   rows [432, 496)
R_FC3 = R_FC2 + H1         # fc3       :     ( 64,  4)   rows [496, 560), lanes [0,4)
R_BIAS = R_FC3 + H2        # biases    : 4 rows          rows [560, 564)
R_TOTAL = R_BIAS + 4       # 564


def textcnn_kernel(x_ref, w_ref, out_ref):
    # Static, sublane-aligned views of the packed parameter slab.
    w_tap = [w_ref[R_W1 + j * E:R_W1 + (j + 1) * E, 0:C] for j in range(K1)]
    fc1_blk = [w_ref[R_FC1 + j * C:R_FC1 + (j + 1) * C, :] for j in range(3)]
    fc2 = w_ref[R_FC2:R_FC2 + H1, :]                       # (64, 64)
    fc3 = w_ref[R_FC3:R_FC3 + H2, 0:NCLS]                  # (64, 4)
    b1 = w_ref[R_BIAS + 0:R_BIAS + 1, 0:C]                 # (1, 16)
    fb1 = w_ref[R_BIAS + 1:R_BIAS + 2, :]                  # (1, 64)
    fb2 = w_ref[R_BIAS + 2:R_BIAS + 3, :]                  # (1, 64)
    fb3 = w_ref[R_BIAS + 3:R_BIAS + 4, 0:NCLS]             # (1, 4)

    for bi in range(B):                                    # B = 2: fully unrolled
        xb = x_ref[bi]                                     # (20, 128), aligned

        # conv1: one aligned MXU dot per kernel-height tap; the 3-tap
        # accumulation happens on the tiny (20,16) outputs via 1/2-row sublane
        # shifts (in-kernel im2col -- no misaligned slicing of matmul inputs).
        y0 = jnp.dot(xb, w_tap[0], preferred_element_type=jnp.float32)
        y1 = jnp.dot(xb, w_tap[1], preferred_element_type=jnp.float32)
        y2 = jnp.dot(xb, w_tap[2], preferred_element_type=jnp.float32)
        c = y0[0:L1, :] + y1[1:L1 + 1, :] + y2[2:L1 + 2, :]      # (18, 16)
        c = jnp.maximum(c + b1, 0.0)                             # bias + ReLU

        # max_pool1d(conv1, 18/17/16) with stride == kernel -> one window each,
        # all over conv1 (module quirk).  Windows nest, so reuse partial maxes.
        p16 = jnp.max(c[0:16, :], axis=0, keepdims=True)         # pool3 (1,16)
        p17 = jnp.maximum(p16, c[16:17, :])                      # pool2
        p18 = jnp.maximum(p17, c[17:18, :])                      # pool1

        # fc1 without a lane-concatenate:
        #   [p18 | p17 | p16] @ fc1 == p18@fc1[0:16] + p17@fc1[16:32] + p16@fc1[32:48]
        h = jnp.dot(p18, fc1_blk[0], preferred_element_type=jnp.float32)
        h += jnp.dot(p17, fc1_blk[1], preferred_element_type=jnp.float32)
        h += jnp.dot(p16, fc1_blk[2], preferred_element_type=jnp.float32)
        h = jnp.maximum(h + fb1, 0.0)                            # (1, 64)
        h = jnp.maximum(
            jnp.dot(h, fc2, preferred_element_type=jnp.float32) + fb2, 0.0)
        out_ref[bi:bi + 1, :] = (
            jnp.dot(h, fc3, preferred_element_type=jnp.float32) + fb3)


def pack_params(params):
    """One-time parameter re-layout into a single (564, 64) f32 slab.

    Runs once at parameter-load time (NOT per forward call): the conv-weight
    transpose, fc transposes, fc1 split and bias packing are all hoisted out
    of the hot path.  conv2/conv3 weights are dead in the original forward
    (their outputs never reach fc1) and are dropped.
    """
    (w1, b1, _w2, _b2, _w3, _b3, fw1, fb1, fw2, fb2, fw3, fb3) = params
    slab = jnp.zeros((R_TOTAL, LANES), jnp.float32)
    for j in range(K1):                                    # conv1 tap j: (128, 16)
        slab = slab.at[R_W1 + j * E:R_W1 + (j + 1) * E, 0:C].set(w1[:, 0, j, :].T)
    fc1 = fw1.T                                            # (48, 64)
    for j in range(3):                                     # fc1 row blocks (16, 64)
        slab = slab.at[R_FC1 + j * C:R_FC1 + (j + 1) * C, :].set(
            fc1[j * C:(j + 1) * C, :])
    slab = slab.at[R_FC2:R_FC2 + H1, :].set(fw2.T)         # (64, 64)
    slab = slab.at[R_FC3:R_FC3 + H2, 0:NCLS].set(fw3.T)    # (64, 4)
    slab = slab.at[R_BIAS + 0, 0:C].set(b1)
    slab = slab.at[R_BIAS + 1, 0:H1].set(fb1)
    slab = slab.at[R_BIAS + 2, 0:H2].set(fb2)
    slab = slab.at[R_BIAS + 3, 0:NCLS].set(fb3)
    return slab


@jax.jit
def textcnn_forward(x, w_slab):
    """Hot path: no per-call re-layout ops, just the Pallas call (2 inputs)."""
    flops = 2 * B * (K1 * S * E * C + 3 * C * H1 + H1 * H2 + H2 * NCLS)
    bytes_accessed = (x.size + w_slab.size + B * NCLS) * 4
    vmem = pl.BlockSpec(memory_space=pltpu.MemorySpace.VMEM)
    return pl.pallas_call(
        textcnn_kernel,
        out_shape=jax.ShapeDtypeStruct((B, NCLS), jnp.float32),
        in_specs=[vmem, vmem],
        out_specs=vmem,
        cost_estimate=pl.CostEstimate(flops=flops, transcendentals=0,
                                      bytes_accessed=bytes_accessed),
    )(x, w_slab)


def torch_style_reference(x, params):
    """Pure-JAX mirror of the PyTorch forward (NCHW conv2d) for verification."""
    (w1, b1, w2, b2, w3, b3, fw1, fb1, fw2, fb2, fw3, fb3) = params
    xi = x[:, None, :, :]                       # (B, 1, S, E) == NCHW
    hp = lax.Precision.HIGHEST

    def conv(w, b):
        y = lax.conv_general_dilated(
            xi, w, (1, 1), 'VALID',
            dimension_numbers=('NCHW', 'OIHW', 'NCHW'), precision=hp)
        return jax.nn.relu(y + b[None, :, None, None])[..., 0]   # (B, 16, L)

    c1 = conv(w1, b1)
    # conv2/conv3 exist in the module but never affect the output; omitted.
    p1 = jnp.max(c1[:, :, 0:18], axis=-1)
    p2 = jnp.max(c1[:, :, 0:17], axis=-1)
    p3 = jnp.max(c1[:, :, 0:16], axis=-1)
    feat = jnp.concatenate([p1, p2, p3], axis=-1)                # (B, 48)
    mm = functools.partial(jnp.matmul, precision=hp)
    h = jax.nn.relu(mm(feat, fw1.T) + fb1)
    h = jax.nn.relu(mm(h, fw2.T) + fb2)
    return mm(h, fw3.T) + fb3


def init_params(key):
    ks = jax.random.split(key, 12)

    def rnd(k, shape, scale=0.1):
        return scale * jax.random.normal(k, shape, dtype=jnp.float32)

    w1, b1 = rnd(ks[0], (C, 1, 3, E)), rnd(ks[1], (C,))
    w2, b2 = rnd(ks[2], (C, 1, 4, E)), rnd(ks[3], (C,))
    w3, b3 = rnd(ks[4], (C, 1, 5, E)), rnd(ks[5], (C,))
    fw1, fb1 = rnd(ks[6], (H1, 3 * C)), rnd(ks[7], (H1,))
    fw2, fb2 = rnd(ks[8], (H2, H1)), rnd(ks[9], (H2,))
    fw3, fb3 = rnd(ks[10], (NCLS, H2)), rnd(ks[11], (NCLS,))
    return (w1, b1, w2, b2, w3, b3, fw1, fb1, fw2, fb2, fw3, fb3)


if __name__ == "__main__":
    key = jax.random.PRNGKey(0)
    kx, kp = jax.random.split(key)
    x = jax.random.normal(kx, (B, S, E), dtype=jnp.float32)
    params = init_params(kp)

    # One-time parameter packing (outside the steady-state forward path).
    w_slab = jax.block_until_ready(pack_params(params))

    out = jax.block_until_ready(textcnn_forward(x, w_slab))
    ref = jax.block_until_ready(torch_style_reference(x, params))

    assert out.shape == (B, NCLS), out.shape
    if not jnp.allclose(out, ref, atol=1e-2, rtol=1e-2):
        raise AssertionError(
            f"mismatch vs reference: max abs err = {jnp.max(jnp.abs(out - ref))}")
    print("KERNEL_OK")
</pallas_src>

<mosaic_0001>
module attributes {stable_mosaic.version = 11 : i64} {
  func.func @textcnn_kernel(%arg0: memref<2x20x128xf32, #tpu.memory_space<vmem>>, %arg1: memref<564x64xf32, #tpu.memory_space<vmem>>, %arg2: memref<2x4xf32, #tpu.memory_space<vmem>>) attributes {dimension_semantics = [], scalar_prefetch = 0 : i64, scratch_operands = 0 : i64, tpu.core_type = #tpu.core_type<tc>} {
    %c0 = arith.constant 0 : index
    %c0_0 = arith.constant 0 : index
    %0 = vector.load %arg1[%c0, %c0_0] : memref<564x64xf32, #tpu.memory_space<vmem>>, vector<128x16xf32>
    %c128 = arith.constant 128 : index
    %c0_1 = arith.constant 0 : index
    %1 = vector.load %arg1[%c128, %c0_1] : memref<564x64xf32, #tpu.memory_space<vmem>>, vector<128x16xf32>
    %c256 = arith.constant 256 : index
    %c0_2 = arith.constant 0 : index
    %2 = vector.load %arg1[%c256, %c0_2] : memref<564x64xf32, #tpu.memory_space<vmem>>, vector<128x16xf32>
    %c384 = arith.constant 384 : index
    %c0_3 = arith.constant 0 : index
    %3 = vector.load %arg1[%c384, %c0_3] : memref<564x64xf32, #tpu.memory_space<vmem>>, vector<16x64xf32>
    %c400 = arith.constant 400 : index
    %c0_4 = arith.constant 0 : index
    %4 = vector.load %arg1[%c400, %c0_4] : memref<564x64xf32, #tpu.memory_space<vmem>>, vector<16x64xf32>
    %c416 = arith.constant 416 : index
    %c0_5 = arith.constant 0 : index
    %5 = vector.load %arg1[%c416, %c0_5] : memref<564x64xf32, #tpu.memory_space<vmem>>, vector<16x64xf32>
    %c432 = arith.constant 432 : index
    %c0_6 = arith.constant 0 : index
    %6 = vector.load %arg1[%c432, %c0_6] : memref<564x64xf32, #tpu.memory_space<vmem>>, vector<64x64xf32>
    %c496 = arith.constant 496 : index
    %c0_7 = arith.constant 0 : index
    %7 = vector.load %arg1[%c496, %c0_7] : memref<564x64xf32, #tpu.memory_space<vmem>>, vector<64x4xf32>
    %c560 = arith.constant 560 : index
    %c0_8 = arith.constant 0 : index
    %8 = vector.load %arg1[%c560, %c0_8] : memref<564x64xf32, #tpu.memory_space<vmem>>, vector<1x16xf32>
    %c561 = arith.constant 561 : index
    %c0_9 = arith.constant 0 : index
    %9 = vector.load %arg1[%c561, %c0_9] : memref<564x64xf32, #tpu.memory_space<vmem>>, vector<1x64xf32>
    %c562 = arith.constant 562 : index
    %c0_10 = arith.constant 0 : index
    %10 = vector.load %arg1[%c562, %c0_10] : memref<564x64xf32, #tpu.memory_space<vmem>>, vector<1x64xf32>
    %c563 = arith.constant 563 : index
    %c0_11 = arith.constant 0 : index
    %11 = vector.load %arg1[%c563, %c0_11] : memref<564x64xf32, #tpu.memory_space<vmem>>, vector<1x4xf32>
    %c0_12 = arith.constant 0 : index
    %c0_13 = arith.constant 0 : index
    %c0_14 = arith.constant 0 : index
    %12 = vector.load %arg0[%c0_12, %c0_13, %c0_14] : memref<2x20x128xf32, #tpu.memory_space<vmem>>, vector<1x20x128xf32>
    %13 = vector.shape_cast %12 : vector<1x20x128xf32> to vector<20x128xf32>
    %cst = arith.constant dense<0.000000e+00> : vector<20x16xf32>
    %14 = tpu.matmul %13, %0, %cst {dimension_numbers = #tpu.dot_dimension_numbers<[1], [0], [0], [1], [0, 0, 1, 1], [], []>} : vector<20x128xf32>, vector<128x16xf32>, vector<20x16xf32> -> vector<20x16xf32>
    %cst_15 = arith.constant dense<0.000000e+00> : vector<20x16xf32>
    %15 = tpu.matmul %13, %1, %cst_15 {dimension_numbers = #tpu.dot_dimension_numbers<[1], [0], [0], [1], [0, 0, 1, 1], [], []>} : vector<20x128xf32>, vector<128x16xf32>, vector<20x16xf32> -> vector<20x16xf32>
    %cst_16 = arith.constant dense<0.000000e+00> : vector<20x16xf32>
    %16 = tpu.matmul %13, %2, %cst_16 {dimension_numbers = #tpu.dot_dimension_numbers<[1], [0], [0], [1], [0, 0, 1, 1], [], []>} : vector<20x128xf32>, vector<128x16xf32>, vector<20x16xf32> -> vector<20x16xf32>
    %17 = vector.extract_strided_slice %14 {offsets = [0, 0], sizes = [18, 16], strides = [1, 1]} : vector<20x16xf32> to vector<18x16xf32>
    %18 = vector.extract_strided_slice %15 {offsets = [1, 0], sizes = [18, 16], strides = [1, 1]} : vector<20x16xf32> to vector<18x16xf32>
    %19 = arith.addf %17, %18 : vector<18x16xf32>
    %20 = vector.extract_strided_slice %16 {offsets = [2, 0], sizes = [18, 16], strides = [1, 1]} : vector<20x16xf32> to vector<18x16xf32>
    %21 = arith.addf %19, %20 : vector<18x16xf32>
    %22 = vector.broadcast %8 : vector<1x16xf32> to vector<18x16xf32>
    %23 = arith.addf %21, %22 : vector<18x16xf32>
    %cst_17 = arith.constant 0.000000e+00 : f32
    %24 = vector.broadcast %cst_17 : f32 to vector<18x16xf32>
    %25 = arith.maximumf %23, %24 : vector<18x16xf32>
    %26 = vector.extract_strided_slice %25 {offsets = [0, 0], sizes = [16, 16], strides = [1, 1]} : vector<18x16xf32> to vector<16x16xf32>
    %cst_18 = arith.constant dense<0xFF800000> : vector<16xf32>
    %27 = vector.multi_reduction <maximumf>, %26, %cst_18 [0] : vector<16x16xf32> to vector<16xf32>
    %28 = vector.shape_cast %27 : vector<16xf32> to vector<1x16xf32>
    %29 = vector.extract_strided_slice %25 {offsets = [16, 0], sizes = [1, 16], strides = [1, 1]} : vector<18x16xf32> to vector<1x16xf32>
    %30 = arith.maximumf %28, %29 : vector<1x16xf32>
    %31 = vector.extract_strided_slice %25 {offsets = [17, 0], sizes = [1, 16], strides = [1, 1]} : vector<18x16xf32> to vector<1x16xf32>
    %32 = arith.maximumf %30, %31 : vector<1x16xf32>
    %cst_19 = arith.constant dense<0.000000e+00> : vector<1x64xf32>
    %33 = tpu.matmul %32, %3, %cst_19 {dimension_numbers = #tpu.dot_dimension_numbers<[1], [0], [0], [1], [0, 0, 1, 1], [], []>} : vector<1x16xf32>, vector<16x64xf32>, vector<1x64xf32> -> vector<1x64xf32>
    %cst_20 = arith.constant dense<0.000000e+00> : vector<1x64xf32>
    %34 = tpu.matmul %30, %4, %cst_20 {dimension_numbers = #tpu.dot_dimension_numbers<[1], [0], [0], [1], [0, 0, 1, 1], [], []>} : vector<1x16xf32>, vector<16x64xf32>, vector<1x64xf32> -> vector<1x64xf32>
    %35 = arith.addf %33, %34 : vector<1x64xf32>
    %cst_21 = arith.constant dense<0.000000e+00> : vector<1x64xf32>
    %36 = tpu.matmul %28, %5, %cst_21 {dimension_numbers = #tpu.dot_dimension_numbers<[1], [0], [0], [1], [0, 0, 1, 1], [], []>} : vector<1x16xf32>, vector<16x64xf32>, vector<1x64xf32> -> vector<1x64xf32>
    %37 = arith.addf %35, %36 : vector<1x64xf32>
    %38 = arith.addf %37, %9 : vector<1x64xf32>
    %cst_22 = arith.constant 0.000000e+00 : f32
    %39 = vector.broadcast %cst_22 : f32 to vector<1x64xf32>
    %40 = arith.maximumf %38, %39 : vector<1x64xf32>
    %cst_23 = arith.constant dense<0.000000e+00> : vector<1x64xf32>
    %41 = tpu.matmul %40, %6, %cst_23 {dimension_numbers = #tpu.dot_dimension_numbers<[1], [0], [0], [1], [0, 0, 1, 1], [], []>} : vector<1x64xf32>, vector<64x64xf32>, vector<1x64xf32> -> vector<1x64xf32>
    %42 = arith.addf %41, %10 : vector<1x64xf32>
    %cst_24 = arith.constant 0.000000e+00 : f32
    %43 = vector.broadcast %cst_24 : f32 to vector<1x64xf32>
    %44 = arith.maximumf %42, %43 : vector<1x64xf32>
    %cst_25 = arith.constant dense<0.000000e+00> : vector<1x4xf32>
    %45 = tpu.matmul %44, %7, %cst_25 {dimension_numbers = #tpu.dot_dimension_numbers<[1], [0], [0], [1], [0, 0, 1, 1], [], []>} : vector<1x64xf32>, vector<64x4xf32>, vector<1x4xf32> -> vector<1x4xf32>
    %46 = arith.addf %45, %11 : vector<1x4xf32>
    %c0_26 = arith.constant 0 : index
    %c0_27 = arith.constant 0 : index
    %47 = vector.load %arg2[%c0_26, %c0_27] : memref<2x4xf32, #tpu.memory_space<vmem>>, vector<1x4xf32>
    tpu.vector_store %arg2[%c0_26, %c0_27], %46 {strides = array<i32>} : memref<2x4xf32, #tpu.memory_space<vmem>>, vector<1x4xf32>,
    %c1 = arith.constant 1 : index
    %c0_28 = arith.constant 0 : index
    %c0_29 = arith.constant 0 : index
    %48 = vector.load %arg0[%c1, %c0_28, %c0_29] : memref<2x20x128xf32, #tpu.memory_space<vmem>>, vector<1x20x128xf32>
    %49 = vector.shape_cast %48 : vector<1x20x128xf32> to vector<20x128xf32>
    %cst_30 = arith.constant dense<0.000000e+00> : vector<20x16xf32>
    %50 = tpu.matmul %49, %0, %cst_30 {dimension_numbers = #tpu.dot_dimension_numbers<[1], [0], [0], [1], [0, 0, 1, 1], [], []>} : vector<20x128xf32>, vector<128x16xf32>, vector<20x16xf32> -> vector<20x16xf32>
    %cst_31 = arith.constant dense<0.000000e+00> : vector<20x16xf32>
    %51 = tpu.matmul %49, %1, %cst_31 {dimension_numbers = #tpu.dot_dimension_numbers<[1], [0], [0], [1], [0, 0, 1, 1], [], []>} : vector<20x128xf32>, vector<128x16xf32>, vector<20x16xf32> -> vector<20x16xf32>
    %cst_32 = arith.constant dense<0.000000e+00> : vector<20x16xf32>
    %52 = tpu.matmul %49, %2, %cst_32 {dimension_numbers = #tpu.dot_dimension_numbers<[1], [0], [0], [1], [0, 0, 1, 1], [], []>} : vector<20x128xf32>, vector<128x16xf32>, vector<20x16xf32> -> vector<20x16xf32>
    %53 = vector.extract_strided_slice %50 {offsets = [0, 0], sizes = [18, 16], strides = [1, 1]} : vector<20x16xf32> to vector<18x16xf32>
    %54 = vector.extract_strided_slice %51 {offsets = [1, 0], sizes = [18, 16], strides = [1, 1]} : vector<20x16xf32> to vector<18x16xf32>
    %55 = arith.addf %53, %54 : vector<18x16xf32>
    %56 = vector.extract_strided_slice %52 {offsets = [2, 0], sizes = [18, 16], strides = [1, 1]} : vector<20x16xf32> to vector<18x16xf32>
    %57 = arith.addf %55, %56 : vector<18x16xf32>
    %58 = vector.broadcast %8 : vector<1x16xf32> to vector<18x16xf32>
    %59 = arith.addf %57, %58 : vector<18x16xf32>
    %cst_33 = arith.constant 0.000000e+00 : f32
    %60 = vector.broadcast %cst_33 : f32 to vector<18x16xf32>
    %61 = arith.maximumf %59, %60 : vector<18x16xf32>
    %62 = vector.extract_strided_slice %61 {offsets = [0, 0], sizes = [16, 16], strides = [1, 1]} : vector<18x16xf32> to vector<16x16xf32>
    %cst_34 = arith.constant dense<0xFF800000> : vector<16xf32>
    %63 = vector.multi_reduction <maximumf>, %62, %cst_34 [0] : vector<16x16xf32> to vector<16xf32>
    %64 = vector.shape_cast %63 : vector<16xf32> to vector<1x16xf32>
    %65 = vector.extract_strided_slice %61 {offsets = [16, 0], sizes = [1, 16], strides = [1, 1]} : vector<18x16xf32> to vector<1x16xf32>
    %66 = arith.maximumf %64, %65 : vector<1x16xf32>
    %67 = vector.extract_strided_slice %61 {offsets = [17, 0], sizes = [1, 16], strides = [1, 1]} : vector<18x16xf32> to vector<1x16xf32>
    %68 = arith.maximumf %66, %67 : vector<1x16xf32>
    %cst_35 = arith.constant dense<0.000000e+00> : vector<1x64xf32>
    %69 = tpu.matmul %68, %3, %cst_35 {dimension_numbers = #tpu.dot_dimension_numbers<[1], [0], [0], [1], [0, 0, 1, 1], [], []>} : vector<1x16xf32>, vector<16x64xf32>, vector<1x64xf32> -> vector<1x64xf32>
    %cst_36 = arith.constant dense<0.000000e+00> : vector<1x64xf32>
    %70 = tpu.matmul %66, %4, %cst_36 {dimension_numbers = #tpu.dot_dimension_numbers<[1], [0], [0], [1], [0, 0, 1, 1], [], []>} : vector<1x16xf32>, vector<16x64xf32>, vector<1x64xf32> -> vector<1x64xf32>
    %71 = arith.addf %69, %70 : vector<1x64xf32>
    %cst_37 = arith.constant dense<0.000000e+00> : vector<1x64xf32>
    %72 = tpu.matmul %64, %5, %cst_37 {dimension_numbers = #tpu.dot_dimension_numbers<[1], [0], [0], [1], [0, 0, 1, 1], [], []>} : vector<1x16xf32>, vector<16x64xf32>, vector<1x64xf32> -> vector<1x64xf32>
    %73 = arith.addf %71, %72 : vector<1x64xf32>
    %74 = arith.addf %73, %9 : vector<1x64xf32>
    %cst_38 = arith.constant 0.000000e+00 : f32
    %75 = vector.broadcast %cst_38 : f32 to vector<1x64xf32>
    %76 = arith.maximumf %74, %75 : vector<1x64xf32>
    %cst_39 = arith.constant dense<0.000000e+00> : vector<1x64xf32>
    %77 = tpu.matmul %76, %6, %cst_39 {dimension_numbers = #tpu.dot_dimension_numbers<[1], [0], [0], [1], [0, 0, 1, 1], [], []>} : vector<1x64xf32>, vector<64x64xf32>, vector<1x64xf32> -> vector<1x64xf32>
    %78 = arith.addf %77, %10 : vector<1x64xf32>
    %cst_40 = arith.constant 0.000000e+00 : f32
    %79 = vector.broadcast %cst_40 : f32 to vector<1x64xf32>
    %80 = arith.maximumf %78, %79 : vector<1x64xf32>
    %cst_41 = arith.constant dense<0.000000e+00> : vector<1x4xf32>
    %81 = tpu.matmul %80, %7, %cst_41 {dimension_numbers = #tpu.dot_dimension_numbers<[1], [0], [0], [1], [0, 0, 1, 1], [], []>} : vector<1x64xf32>, vector<64x4xf32>, vector<1x4xf32> -> vector<1x4xf32>
    %82 = arith.addf %81, %11 : vector<1x4xf32>
    %c1_42 = arith.constant 1 : index
    %c0_43 = arith.constant 0 : index
    %83 = vector.load %arg2[%c1_42, %c0_43] : memref<2x4xf32, #tpu.memory_space<vmem>>, vector<1x4xf32>
    tpu.vector_store %arg2[%c1_42, %c0_43], %82 {strides = array<i32>} : memref<2x4xf32, #tpu.memory_space<vmem>>, vector<1x4xf32>,
    return
  }
}

</mosaic_0001>

<llo_original>
// kernel: textcnn_forward.1
$region0: #{textcnn_forward.1}
  #allocation0 [shape = 'u32[]', space=smem, size = 0x4, offset = 0x4, fixed_abs, tag = 'smem constant byte address 0x4 - core index']
  #allocation1 [shape = 'u32[144,128]{1,0:T(1,128)}', space=vmem, size = 0x12000, scoped, tag = 'internal scratch']
  %s0 = inlined_call_operand.vmem [shape: f32[2,20,128], index: 0, kind: input, shape index: {}]
  %s1 = inlined_call_operand.vmem [shape: f32[564,64], index: 1, kind: input, shape index: {}]
  %s2 = inlined_call_operand.hbm [shape: f32[2,4], index: 2, kind: output, shape index: {}]
  %s3 = sld [smem:[#allocation0]]
  $region18: #{textcnn_forward.1} parent=0
    _
  %s5 = ssub.s32 1, %s3
  %s6 = scalar_select 0, %s5, %s3
  $region1: #{textcnn_forward.1} parent=0
    #allocation2 [shape = 'u8[1024]{0}', space=vmem, size = 0x400, scoped, tag = 'output window, operand 0, single buffered']
    #allocation3 [shape = 's32[1]{0}', space=sflag, size = 0x4, scoped, tag = 'scoped memory for textcnn_forward.1']
    %7 = vsyncpa [#allocation3], 0
    // Predicated region
    $region2: #{textcnn_forward.1} parent=1 // pred_check
      _
    $region3: #{textcnn_forward.1} parent=1 // pred_check_branch
      %9 = sbr.rel (0) target = $region5
    $region4: #{textcnn_forward.1} parent=1 // pred_region
      _
    $region5: #{textcnn_forward.1} parent=1 // pred_fallthru
      _
    // Predicated region
    $region6: #{textcnn_forward.1} parent=1 // pred_check
      _
    $region7: #{textcnn_forward.1} parent=1 // pred_check_branch
      %11 = sbr.rel (0) target = $region9
    $region8: #{textcnn_forward.1} parent=1 // pred_region
      _
    $region9: #{textcnn_forward.1} parent=1 // pred_fallthru
      _
    %v12 = vld [vmem:[%s1] sm:$0xff]
    %v13 = vld [vmem:[%s1 + $0x8] sm:$0xff]
    %v14 = vld [vmem:[%s1 + $0x10] sm:$0xff]
    %v15 = vld [vmem:[%s1 + $0x18] sm:$0xff]
    %v16 = vld [vmem:[%s1 + $0x20] sm:$0xff]
    %v17 = vld [vmem:[%s1 + $0x28] sm:$0xff]
    %v18 = vld [vmem:[%s1 + $0x30] sm:$0xff]
    %v19 = vld [vmem:[%s1 + $0x38] sm:$0xff]
    %v20 = vld [vmem:[%s1 + $0x40] sm:$0xff]
    %v21 = vld [vmem:[%s1 + $0x48] sm:$0xff]
    %v22 = vld [vmem:[%s1 + $0x50] sm:$0xff]
    %v23 = vld [vmem:[%s1 + $0x58] sm:$0xff]
    %v24 = vld [vmem:[%s1 + $0x60] sm:$0xff]
    %v25 = vld [vmem:[%s1 + $0x68] sm:$0xff]
    %v26 = vld [vmem:[%s1 + $0x70] sm:$0xff]
    %v27 = vld [vmem:[%s1 + $0x78] sm:$0xff]
    %v28 = vld [vmem:[%s1 + $0x80] sm:$0xff]
    %v29 = vld [vmem:[%s1 + $0x88] sm:$0xff]
    %v30 = vld [vmem:[%s1 + $0x90] sm:$0xff]
    %v31 = vld [vmem:[%s1 + $0x98] sm:$0xff]
    %v32 = vld [vmem:[%s1 + $0xa0] sm:$0xff]
    %v33 = vld [vmem:[%s1 + $0xa8] sm:$0xff]
    %v34 = vld [vmem:[%s1 + $0xb0] sm:$0xff]
    %v35 = vld [vmem:[%s1 + $0xb8] sm:$0xff]
    %v36 = vld [vmem:[%s1 + $0xc0] sm:$0xff]
    %v37 = vld [vmem:[%s1 + $0xc8] sm:$0xff]
    %v38 = vld [vmem:[%s1 + $0xd0] sm:$0xff]
    %v39 = vld [vmem:[%s1 + $0xd8] sm:$0xff]
    %v40 = vld [vmem:[%s1 + $0xe0] sm:$0xff]
    %v41 = vld [vmem:[%s1 + $0xe8] sm:$0xff]
    %v42 = vld [vmem:[%s1 + $0xf0] sm:$0xff]
    %v43 = vld [vmem:[%s1 + $0xf8] sm:$0xff]
    %v44 = vld [vmem:[%s1 + $0x100] sm:$0xff]
    %v45 = vld [vmem:[%s1 + $0x108] sm:$0xff]
    %v46 = vld [vmem:[%s1 + $0x110] sm:$0xff]
    %v47 = vld [vmem:[%s1 + $0x118] sm:$0xff]
    %v48 = vld [vmem:[%s1 + $0x120] sm:$0xff]
    %v49 = vld [vmem:[%s1 + $0x128] sm:$0xff]
    %v50 = vld [vmem:[%s1 + $0x130] sm:$0xff]
    %v51 = vld [vmem:[%s1 + $0x138] sm:$0xff]
    %v52 = vld [vmem:[%s1 + $0x140] sm:$0xff]
    %v53 = vld [vmem:[%s1 + $0x148] sm:$0xff]
    %v54 = vld [vmem:[%s1 + $0x150] sm:$0xff]
    %v55 = vld [vmem:[%s1 + $0x158] sm:$0xff]
    %v56 = vld [vmem:[%s1 + $0x160] sm:$0xff]
    %v57 = vld [vmem:[%s1 + $0x168] sm:$0xff]
    %v58 = vld [vmem:[%s1 + $0x170] sm:$0xff]
    %v59 = vld [vmem:[%s1 + $0x178] sm:$0xff]
    %v60 = vld [vmem:[%s1 + $0x180] sm:$0xff]
    %v61 = vld [vmem:[%s1 + $0x188] sm:$0xff]
    %v62 = vld [vmem:[%s1 + $0x190] sm:$0xff]
    %v63 = vld [vmem:[%s1 + $0x198] sm:$0xff]
    %v64 = vld [vmem:[%s1 + $0x1a0] sm:$0xff]
    %v65 = vld [vmem:[%s1 + $0x1a8] sm:$0xff]
    %v66 = vld [vmem:[%s1 + $0x1b0] sm:$0xff]
    %v67 = vld [vmem:[%s1 + $0x1b8] sm:$0xff]
    %v68 = vld [vmem:[%s1 + $0x1c0] sm:$0xff]
    %v69 = vld [vmem:[%s1 + $0x1c8] sm:$0xff]
    %v70 = vld [vmem:[%s1 + $0x1d0] sm:$0xff]
    %v71 = vld [vmem:[%s1 + $0x1d8] sm:$0xff]
    %v72 = vld [vmem:[%s1 + $0x1e0] sm:$0xff]
    %v73 = vld [vmem:[%s1 + $0x1e8] sm:$0xff]
    %v74 = vld [vmem:[%s1 + $0x1f0] sm:$0xff]
    %v75 = vld [vmem:[%s1 + $0x1f8] sm:$0xff]
    %v76 = vld [vmem:[%s1 + $0x200] sm:$0xff]
    %v77 = vld [vmem:[%s1 + $0x208] sm:$0xff]
    %v78 = vld [vmem:[%s1 + $0x210] sm:$0xff]
    %v79 = vld [vmem:[%s1 + $0x218] sm:$0xff]
    %v80 = vld [vmem:[%s1 + $0x220] sm:$0xff]
    %v81 = vld [vmem:[%s1 + $0x228] sm:$0xff]
    %v82 = vld [vmem:[%s1 + $0x230] sm:$0x1]
    %v83 = vld [vmem:[%s1 + $0x231] sm:$0x1]
    %v84 = vld [vmem:[%s1 + $0x232] sm:$0x1]
    %v85 = vld [vmem:[%s1 + $0x233] sm:$0x1]
    %v86 = vld [vmem:[%s0] sm:$0xff]
    %v87 = vld [vmem:[%s0 + $0x8] sm:$0xff]
    %v88 = vld [vmem:[%s0 + $0x10] sm:$0xf]
    %89 = vmatprep.subr.mxu0 0.0
    %90 = vmatpush1.msra.mxu0 %v27
    %91 = vmatprep.subr.mxu0 0.0
    %92 = vmatpush1.msra.mxu0 %v26
    %93 = vmatprep.subr.mxu0 0.0
    %94 = vmatpush1.msra.mxu0 %v25
    %95 = vmatprep.subr.mxu0 0.0
    %96 = vmatpush1.msra.mxu0 %v24
    %97 = vmatprep.subr.mxu0 0.0
    %98 = vmatpush1.msra.mxu0 %v23
    %99 = vmatprep.subr.mxu0 0.0
    %100 = vmatpush1.msra.mxu0 %v22
    %101 = vmatprep.subr.mxu0 0.0
    %102 = vmatpush1.msra.mxu0 %v21
    %103 = vmatprep.subr.mxu0 0.0
    %104 = vmatpush1.msra.mxu0 %v20
    %105 = vmatprep.subr.mxu0 0.0
    %106 = vmatpush1.msra.mxu0 %v19
    %107 = vmatprep.subr.mxu0 0.0
    %108 = vmatpush1.msra.mxu0 %v18
    %109 = vmatprep.subr.mxu0 0.0
    %110 = vmatpush1.msra.mxu0 %v17
    %111 = vmatprep.subr.mxu0 0.0
    %112 = vmatpush1.msra.mxu0 %v16
    %113 = vmatprep.subr.mxu0 0.0
    %114 = vmatpush1.msra.mxu0 %v15
    %115 = vmatprep.subr.mxu0 0.0
    %116 = vmatpush1.msra.mxu0 %v14
    %117 = vmatprep.subr.mxu0 0.0
    %118 = vmatpush1.msra.mxu0 %v13
    %119 = vmatprep.subr.mxu0 0.0
    %120 = vmatpush1.msra.mxu0 %v12
    %121 = vmatprep.subr.mxu0 0.0
    %122 = vmatpush2.msra.mxu0 0.0
    %123 = vmatprep.subr.mxu0 0.0
    %124 = vmatpush2.msra.mxu0 0.0
    %125 = vmatprep.subr.mxu0 0.0
    %126 = vmatpush2.msra.mxu0 0.0
    %127 = vmatprep.subr.mxu0 0.0
    %128 = vmatpush2.msra.mxu0 0.0
    %129 = vmatprep.subr.mxu0 0.0
    %130 = vmatpush2.msra.mxu0 0.0
    %131 = vmatprep.subr.mxu0 0.0
    %132 = vmatpush2.msra.mxu0 0.0
    %133 = vmatprep.subr.mxu0 0.0
    %134 = vmatpush2.msra.mxu0 0.0
    %135 = vmatprep.subr.mxu0 0.0
    %136 = vmatpush2.msra.mxu0 0.0
    %137 = vmatprep.subr.mxu0 0.0
    %138 = vmatpush2.msra.mxu0 0.0
    %139 = vmatprep.subr.mxu0 0.0
    %140 = vmatpush2.msra.mxu0 0.0
    %141 = vmatprep.subr.mxu0 0.0
    %142 = vmatpush2.msra.mxu0 0.0
    %143 = vmatprep.subr.mxu0 0.0
    %144 = vmatpush2.msra.mxu0 0.0
    %145 = vmatprep.subr.mxu0 0.0
    %146 = vmatpush2.msra.mxu0 0.0
    %147 = vmatprep.subr.mxu0 0.0
    %148 = vmatpush2.msra.mxu0 0.0
    %149 = vmatprep.subr.mxu0 0.0
    %150 = vmatpush2.msra.mxu0 0.0
    %151 = vmatprep.subr.mxu0 0.0
    %152 = vmatpush2.msra.mxu0 0.0
    %153 = vmatprep.mubr.f32.mxu0 0.0
    %154 = vmatmul.mubr.f32.gmra.mxu0 %v86
    %v155 = vpop.f32.mrf.mxu0
    %v156 = vadd.f32 0.0, %v155
    %v157 = vpop.f32.mrf.mxu0
    %158 = vmatprep.mubr.f32.mxu0 0.0
    %159 = vmatmul.mubr.f32.gmra.mxu0 %v87
    %v160 = vpop.f32.mrf.mxu0
    %v161 = vadd.f32 0.0, %v160
    %v162 = vpop.f32.mrf.mxu0
    %163 = vmatprep.mubr.f32.mxu0 0.0
    %164 = vmatmul.mubr.f32.gmra.mxu0 %v88
    %v165 = vpop.f32.mrf.mxu0
    %v166 = vadd.f32 0.0, %v165
    %v167 = vpop.f32.mrf.mxu0
    %168 = vdwg.mxu0
    %169 = vmatprep.subr.mxu0 0.0
    %170 = vmatpush1.msra.mxu0 %v43
    %171 = vmatprep.subr.mxu0 0.0
    %172 = vmatpush1.msra.mxu0 %v42
    %173 = vmatprep.subr.mxu0 0.0
    %174 = vmatpush1.msra.mxu0 %v41
    %175 = vmatprep.subr.mxu0 0.0
    %176 = vmatpush1.msra.mxu0 %v40
    %177 = vmatprep.subr.mxu0 0.0
    %178 = vmatpush1.msra.mxu0 %v39
    %179 = vmatprep.subr.mxu0 0.0
    %180 = vmatpush1.msra.mxu0 %v38
    %181 = vmatprep.subr.mxu0 0.0
    %182 = vmatpush1.msra.mxu0 %v37
    %183 = vmatprep.subr.mxu0 0.0
    %184 = vmatpush1.msra.mxu0 %v36
    %185 = vmatprep.subr.mxu0 0.0
    %186 = vmatpush1.msra.mxu0 %v35
    %187 = vmatprep.subr.mxu0 0.0
    %188 = vmatpush1.msra.mxu0 %v34
    %189 = vmatprep.subr.mxu0 0.0
    %190 = vmatpush1.msra.mxu0 %v33
    %191 = vmatprep.subr.mxu0 0.0
    %192 = vmatpush1.msra.mxu0 %v32
    %193 = vmatprep.subr.mxu0 0.0
    %194 = vmatpush1.msra.mxu0 %v31
    %195 = vmatprep.subr.mxu0 0.0
    %196 = vmatpush1.msra.mxu0 %v30
    %197 = vmatprep.subr.mxu0 0.0
    %198 = vmatpush1.msra.mxu0 %v29
    %199 = vmatprep.subr.mxu0 0.0
    %200 = vmatpush1.msra.mxu0 %v28
    %201 = vmatprep.subr.mxu0 0.0
    %202 = vmatpush2.msra.mxu0 0.0
    %203 = vmatprep.subr.mxu0 0.0
    %204 = vmatpush2.msra.mxu0 0.0
    %205 = vmatprep.subr.mxu0 0.0
    %206 = vmatpush2.msra.mxu0 0.0
    %207 = vmatprep.subr.mxu0 0.0
    %208 = vmatpush2.msra.mxu0 0.0
    %209 = vmatprep.subr.mxu0 0.0
    %210 = vmatpush2.msra.mxu0 0.0
    %211 = vmatprep.subr.mxu0 0.0
    %212 = vmatpush2.msra.mxu0 0.0
    %213 = vmatprep.subr.mxu0 0.0
    %214 = vmatpush2.msra.mxu0 0.0
    %215 = vmatprep.subr.mxu0 0.0
    %216 = vmatpush2.msra.mxu0 0.0
    %217 = vmatprep.subr.mxu0 0.0
    %218 = vmatpush2.msra.mxu0 0.0
    %219 = vmatprep.subr.mxu0 0.0
    %220 = vmatpush2.msra.mxu0 0.0
    %221 = vmatprep.subr.mxu0 0.0
    %222 = vmatpush2.msra.mxu0 0.0
    %223 = vmatprep.subr.mxu0 0.0
    %224 = vmatpush2.msra.mxu0 0.0
    %225 = vmatprep.subr.mxu0 0.0
    %226 = vmatpush2.msra.mxu0 0.0
    %227 = vmatprep.subr.mxu0 0.0
    %228 = vmatpush2.msra.mxu0 0.0
    %229 = vmatprep.subr.mxu0 0.0
    %230 = vmatpush2.msra.mxu0 0.0
    %231 = vmatprep.subr.mxu0 0.0
    %232 = vmatpush2.msra.mxu0 0.0
    %233 = vmatprep.mubr.f32.mxu0 0.0
    %234 = vmatmul.mubr.f32.gmra.mxu0 %v86
    %v235 = vpop.f32.mrf.mxu0
    %v236 = vadd.f32 0.0, %v235
    %v237 = vpop.f32.mrf.mxu0
    %238 = vmatprep.mubr.f32.mxu0 0.0
    %239 = vmatmul.mubr.f32.gmra.mxu0 %v87
    %v240 = vpop.f32.mrf.mxu0
    %v241 = vadd.f32 0.0, %v240
    %v242 = vpop.f32.mrf.mxu0
    %243 = vmatprep.mubr.f32.mxu0 0.0
    %244 = vmatmul.mubr.f32.gmra.mxu0 %v88
    %v245 = vpop.f32.mrf.mxu0
    %v246 = vadd.f32 0.0, %v245
    %v247 = vpop.f32.mrf.mxu0
    %248 = vdwg.mxu0
    %249 = vmatprep.subr.mxu0 0.0
    %250 = vmatpush1.msra.mxu0 %v59
    %251 = vmatprep.subr.mxu0 0.0
    %252 = vmatpush1.msra.mxu0 %v58
    %253 = vmatprep.subr.mxu0 0.0
    %254 = vmatpush1.msra.mxu0 %v57
    %255 = vmatprep.subr.mxu0 0.0
    %256 = vmatpush1.msra.mxu0 %v56
    %257 = vmatprep.subr.mxu0 0.0
    %258 = vmatpush1.msra.mxu0 %v55
    %259 = vmatprep.subr.mxu0 0.0
    %260 = vmatpush1.msra.mxu0 %v54
    %261 = vmatprep.subr.mxu0 0.0
    %262 = vmatpush1.msra.mxu0 %v53
    %263 = vmatprep.subr.mxu0 0.0
    %264 = vmatpush1.msra.mxu0 %v52
    %265 = vmatprep.subr.mxu0 0.0
    %266 = vmatpush1.msra.mxu0 %v51
    %267 = vmatprep.subr.mxu0 0.0
    %268 = vmatpush1.msra.mxu0 %v50
    %269 = vmatprep.subr.mxu0 0.0
    %270 = vmatpush1.msra.mxu0 %v49
    %271 = vmatprep.subr.mxu0 0.0
    %272 = vmatpush1.msra.mxu0 %v48
    %273 = vmatprep.subr.mxu0 0.0
    %274 = vmatpush1.msra.mxu0 %v47
    %275 = vmatprep.subr.mxu0 0.0
    %276 = vmatpush1.msra.mxu0 %v46
    %277 = vmatprep.subr.mxu0 0.0
    %278 = vmatpush1.msra.mxu0 %v45
    %279 = vmatprep.subr.mxu0 0.0
    %280 = vmatpush1.msra.mxu0 %v44
    %281 = vmatprep.subr.mxu0 0.0
    %282 = vmatpush2.msra.mxu0 0.0
    %283 = vmatprep.subr.mxu0 0.0
    %284 = vmatpush2.msra.mxu0 0.0
    %285 = vmatprep.subr.mxu0 0.0
    %286 = vmatpush2.msra.mxu0 0.0
    %287 = vmatprep.subr.mxu0 0.0
    %288 = vmatpush2.msra.mxu0 0.0
    %289 = vmatprep.subr.mxu0 0.0
    %290 = vmatpush2.msra.mxu0 0.0
    %291 = vmatprep.subr.mxu0 0.0
    %292 = vmatpush2.msra.mxu0 0.0
    %293 = vmatprep.subr.mxu0 0.0
    %294 = vmatpush2.msra.mxu0 0.0
    %295 = vmatprep.subr.mxu0 0.0
    %296 = vmatpush2.msra.mxu0 0.0
    %297 = vmatprep.subr.mxu0 0.0
    %298 = vmatpush2.msra.mxu0 0.0
    %299 = vmatprep.subr.mxu0 0.0
    %300 = vmatpush2.msra.mxu0 0.0
    %301 = vmatprep.subr.mxu0 0.0
    %302 = vmatpush2.msra.mxu0 0.0
    %303 = vmatprep.subr.mxu0 0.0
    %304 = vmatpush2.msra.mxu0 0.0
    %305 = vmatprep.subr.mxu0 0.0
    %306 = vmatpush2.msra.mxu0 0.0
    %307 = vmatprep.subr.mxu0 0.0
    %308 = vmatpush2.msra.mxu0 0.0
    %309 = vmatprep.subr.mxu0 0.0
    %310 = vmatpush2.msra.mxu0 0.0
    %311 = vmatprep.subr.mxu0 0.0
    %312 = vmatpush2.msra.mxu0 0.0
    %313 = vmatprep.mubr.f32.mxu0 0.0
    %314 = vmatmul.mubr.f32.gmra.mxu0 %v86
    %v315 = vpop.f32.mrf.mxu0
    %v316 = vadd.f32 0.0, %v315
    %v317 = vpop.f32.mrf.mxu0
    %318 = vmatprep.mubr.f32.mxu0 0.0
    %319 = vmatmul.mubr.f32.gmra.mxu0 %v87
    %v320 = vpop.f32.mrf.mxu0
    %v321 = vadd.f32 0.0, %v320
    %v322 = vpop.f32.mrf.mxu0
    %323 = vmatprep.mubr.f32.mxu0 0.0
    %324 = vmatmul.mubr.f32.gmra.mxu0 %v88
    %v325 = vpop.f32.mrf.mxu0
    %v326 = vadd.f32 0.0, %v325
    %v327 = vpop.f32.mrf.mxu0
    %328 = vdwg.mxu0
    %vm332 = vcmask 1046528
    %v333 = vrot.slane %v236, 1
    %v334 = vrot.slane %v241, 1
    %v335 = vsel %vm332, %v333, %v334
    %v336 = vrot.slane %v246, 1
    %v337 = vsel %vm332, %v334, %v336
    %v341 = vadd.f32 %v156, %v335
    %v342 = vadd.f32 %v161, %v337
    %v343 = vadd.f32 %v166, %v336
    %vm347 = vcmask 1045504
    %v348 = vrot.slane %v316, 2
    %v349 = vrot.slane %v321, 2
    %v350 = vsel %vm347, %v348, %v349
    %v351 = vrot.slane %v326, 2
    %v352 = vsel %vm347, %v349, %v351
    %v356 = vadd.f32 %v341, %v350
    %v357 = vadd.f32 %v342, %v352
    %v358 = vadd.f32 %v343, %v351
    %v359 = vlaneseq
    %v360 = vshrl.u32 %v359, 7
    %v361 = vsub.s32 0, %v360
    %v362 = vrot.slane %v82, %v361
    %v363 = vadd.f32 %v356, %v362
    %v364 = vadd.f32 %v357, %v362
    %v365 = vadd.f32 %v358, %v362
    %v366 = vmax.f32 %v363, 0.0
    %v367 = vmax.f32 %v364, 0.0
    %v368 = vmax.f32 %v365, 0.0
    %vm369 = vcmask 130048
    %v370 = vsel %vm369, %v366, -inf
    %v371 = vsel %vm369, %v367, -inf
    %v372 = vmax.f32 %v370, %v371
    %v373 = vrot.slane %v372, 4
    %v374 = vmax.f32 %v372, %v373
    %v375 = vrot.slane %v374, 2
    %v376 = vmax.f32 %v374, %v375
    %v377 = vrot.slane %v376, 1
    %v378 = vmax.f32 %v376, %v377
    %v379 = vmax.f32 %v378, %v368
    %v381 = vrot.slane %v368, 1
    %v383 = vmax.f32 %v379, %v381
    %v385 = vsel %vm369, %v379, 0
    %387 = vmatprep.subr.mxu0 0.0
    %388 = vmatpush1.msra.mxu0 0.0
    %389 = vmatprep.subr.mxu0 0.0
    %390 = vmatpush1.msra.mxu0 0.0
    %391 = vmatprep.subr.mxu0 0.0
    %392 = vmatpush1.msra.mxu0 0.0
    %393 = vmatprep.subr.mxu0 0.0
    %394 = vmatpush1.msra.mxu0 0.0
    %395 = vmatprep.subr.mxu0 0.0
    %396 = vmatpush1.msra.mxu0 0.0
    %397 = vmatprep.subr.mxu0 0.0
    %398 = vmatpush1.msra.mxu0 0.0
    %399 = vmatprep.subr.mxu0 0.0
    %400 = vmatpush1.msra.mxu0 0.0
    %401 = vmatprep.subr.mxu0 0.0
    %402 = vmatpush1.msra.mxu0 0.0
    %403 = vmatprep.subr.mxu0 0.0
    %404 = vmatpush1.msra.mxu0 0.0
    %405 = vmatprep.subr.mxu0 0.0
    %406 = vmatpush1.msra.mxu0 0.0
    %407 = vmatprep.subr.mxu0 0.0
    %408 = vmatpush1.msra.mxu0 0.0
    %409 = vmatprep.subr.mxu0 0.0
    %410 = vmatpush1.msra.mxu0 0.0
    %411 = vmatprep.subr.mxu0 0.0
    %412 = vmatpush1.msra.mxu0 0.0
    %413 = vmatprep.subr.mxu0 0.0
    %414 = vmatpush1.msra.mxu0 0.0
    %415 = vmatprep.subr.mxu0 0.0
    %416 = vmatpush1.msra.mxu0 %v63
    %417 = vmatprep.subr.mxu0 0.0
    %418 = vmatpush1.msra.mxu0 %v62
    %419 = vmatprep.subr.mxu0 0.0
    %420 = vmatpush2.msra.mxu0 0.0
    %421 = vmatprep.subr.mxu0 0.0
    %422 = vmatpush2.msra.mxu0 0.0
    %423 = vmatprep.subr.mxu0 0.0
    %424 = vmatpush2.msra.mxu0 0.0
    %425 = vmatprep.subr.mxu0 0.0
    %426 = vmatpush2.msra.mxu0 0.0
    %427 = vmatprep.subr.mxu0 0.0
    %428 = vmatpush2.msra.mxu0 0.0
    %429 = vmatprep.subr.mxu0 0.0
    %430 = vmatpush2.msra.mxu0 0.0
    %431 = vmatprep.subr.mxu0 0.0
    %432 = vmatpush2.msra.mxu0 0.0
    %433 = vmatprep.subr.mxu0 0.0
    %434 = vmatpush2.msra.mxu0 0.0
    %435 = vmatprep.subr.mxu0 0.0
    %436 = vmatpush2.msra.mxu0 0.0
    %437 = vmatprep.subr.mxu0 0.0
    %438 = vmatpush2.msra.mxu0 0.0
    %439 = vmatprep.subr.mxu0 0.0
    %440 = vmatpush2.msra.mxu0 0.0
    %441 = vmatprep.subr.mxu0 0.0
    %442 = vmatpush2.msra.mxu0 0.0
    %443 = vmatprep.subr.mxu0 0.0
    %444 = vmatpush2.msra.mxu0 0.0
    %445 = vmatprep.subr.mxu0 0.0
    %446 = vmatpush2.msra.mxu0 0.0
    %447 = vmatprep.subr.mxu0 0.0
    %448 = vmatpush2.msra.mxu0 0.0
    %449 = vmatprep.subr.mxu0 0.0
    %450 = vmatpush2.msra.mxu0 0.0
    %451 = vmatprep.mubr.f32.mxu0 0.0
    %452 = vmatmul.mubr.f32.gmra.mxu0 %v385
    %v453 = vpop.f32.mrf.mxu0
    %v454 = vadd.f32 0.0, %v453
    %v455 = vpop.f32.mrf.mxu0
    %456 = vdwg.mxu0
    %v458 = vsel %vm369, %v383, 0
    %460 = vmatprep.subr.mxu0 0.0
    %461 = vmatpush1.msra.mxu0 0.0
    %462 = vmatprep.subr.mxu0 0.0
    %463 = vmatpush1.msra.mxu0 0.0
    %464 = vmatprep.subr.mxu0 0.0
    %465 = vmatpush1.msra.mxu0 0.0
    %466 = vmatprep.subr.mxu0 0.0
    %467 = vmatpush1.msra.mxu0 0.0
    %468 = vmatprep.subr.mxu0 0.0
    %469 = vmatpush1.msra.mxu0 0.0
    %470 = vmatprep.subr.mxu0 0.0
    %471 = vmatpush1.msra.mxu0 0.0
    %472 = vmatprep.subr.mxu0 0.0
    %473 = vmatpush1.msra.mxu0 0.0
    %474 = vmatprep.subr.mxu0 0.0
    %475 = vmatpush1.msra.mxu0 0.0
    %476 = vmatprep.subr.mxu0 0.0
    %477 = vmatpush1.msra.mxu0 0.0
    %478 = vmatprep.subr.mxu0 0.0
    %479 = vmatpush1.msra.mxu0 0.0
    %480 = vmatprep.subr.mxu0 0.0
    %481 = vmatpush1.msra.mxu0 0.0
    %482 = vmatprep.subr.mxu0 0.0
    %483 = vmatpush1.msra.mxu0 0.0
    %484 = vmatprep.subr.mxu0 0.0
    %485 = vmatpush1.msra.mxu0 0.0
    %486 = vmatprep.subr.mxu0 0.0
    %487 = vmatpush1.msra.mxu0 0.0
    %488 = vmatprep.subr.mxu0 0.0
    %489 = vmatpush1.msra.mxu0 %v61
    %490 = vmatprep.subr.mxu0 0.0
    %491 = vmatpush1.msra.mxu0 %v60
    %492 = vmatprep.subr.mxu0 0.0
    %493 = vmatpush2.msra.mxu0 0.0
    %494 = vmatprep.subr.mxu0 0.0
    %495 = vmatpush2.msra.mxu0 0.0
    %496 = vmatprep.subr.mxu0 0.0
    %497 = vmatpush2.msra.mxu0 0.0
    %498 = vmatprep.subr.mxu0 0.0
    %499 = vmatpush2.msra.mxu0 0.0
    %500 = vmatprep.subr.mxu0 0.0
    %501 = vmatpush2.msra.mxu0 0.0
    %502 = vmatprep.subr.mxu0 0.0
    %503 = vmatpush2.msra.mxu0 0.0
    %504 = vmatprep.subr.mxu0 0.0
    %505 = vmatpush2.msra.mxu0 0.0
    %506 = vmatprep.subr.mxu0 0.0
    %507 = vmatpush2.msra.mxu0 0.0
    %508 = vmatprep.subr.mxu0 0.0
    %509 = vmatpush2.msra.mxu0 0.0
    %510 = vmatprep.subr.mxu0 0.0
    %511 = vmatpush2.msra.mxu0 0.0
    %512 = vmatprep.subr.mxu0 0.0
    %513 = vmatpush2.msra.mxu0 0.0
    %514 = vmatprep.subr.mxu0 0.0
    %515 = vmatpush2.msra.mxu0 0.0
    %516 = vmatprep.subr.mxu0 0.0
    %517 = vmatpush2.msra.mxu0 0.0
    %518 = vmatprep.subr.mxu0 0.0
    %519 = vmatpush2.msra.mxu0 0.0
    %520 = vmatprep.subr.mxu0 0.0
    %521 = vmatpush2.msra.mxu0 0.0
    %522 = vmatprep.subr.mxu0 0.0
    %523 = vmatpush2.msra.mxu0 0.0
    %524 = vmatprep.mubr.f32.mxu0 0.0
    %525 = vmatmul.mubr.f32.gmra.mxu0 %v458
    %v526 = vpop.f32.mrf.mxu0
    %v527 = vadd.f32 %v454, %v526
    %v528 = vpop.f32.mrf.mxu0
    %529 = vdwg.mxu0
    %v531 = vsel %vm369, %v378, 0
    %533 = vmatprep.subr.mxu0 0.0
    %534 = vmatpush1.msra.mxu0 0.0
    %535 = vmatprep.subr.mxu0 0.0
    %536 = vmatpush1.msra.mxu0 0.0
    %537 = vmatprep.subr.mxu0 0.0
    %538 = vmatpush1.msra.mxu0 0.0
    %539 = vmatprep.subr.mxu0 0.0
    %540 = vmatpush1.msra.mxu0 0.0
    %541 = vmatprep.subr.mxu0 0.0
    %542 = vmatpush1.msra.mxu0 0.0
    %543 = vmatprep.subr.mxu0 0.0
    %544 = vmatpush1.msra.mxu0 0.0
    %545 = vmatprep.subr.mxu0 0.0
    %546 = vmatpush1.msra.mxu0 0.0
    %547 = vmatprep.subr.mxu0 0.0
    %548 = vmatpush1.msra.mxu0 0.0
    %549 = vmatprep.subr.mxu0 0.0
    %550 = vmatpush1.msra.mxu0 0.0
    %551 = vmatprep.subr.mxu0 0.0
    %552 = vmatpush1.msra.mxu0 0.0
    %553 = vmatprep.subr.mxu0 0.0
    %554 = vmatpush1.msra.mxu0 0.0
    %555 = vmatprep.subr.mxu0 0.0
    %556 = vmatpush1.msra.mxu0 0.0
    %557 = vmatprep.subr.mxu0 0.0
    %558 = vmatpush1.msra.mxu0 0.0
    %559 = vmatprep.subr.mxu0 0.0
    %560 = vmatpush1.msra.mxu0 0.0
    %561 = vmatprep.subr.mxu0 0.0
    %562 = vmatpush1.msra.mxu0 %v65
    %563 = vmatprep.subr.mxu0 0.0
    %564 = vmatpush1.msra.mxu0 %v64
    %565 = vmatprep.subr.mxu0 0.0
    %566 = vmatpush2.msra.mxu0 0.0
    %567 = vmatprep.subr.mxu0 0.0
    %568 = vmatpush2.msra.mxu0 0.0
    %569 = vmatprep.subr.mxu0 0.0
    %570 = vmatpush2.msra.mxu0 0.0
    %571 = vmatprep.subr.mxu0 0.0
    %572 = vmatpush2.msra.mxu0 0.0
    %573 = vmatprep.subr.mxu0 0.0
    %574 = vmatpush2.msra.mxu0 0.0
    %575 = vmatprep.subr.mxu0 0.0
    %576 = vmatpush2.msra.mxu0 0.0
    %577 = vmatprep.subr.mxu0 0.0
    %578 = vmatpush2.msra.mxu0 0.0
    %579 = vmatprep.subr.mxu0 0.0
    %580 = vmatpush2.msra.mxu0 0.0
    %581 = vmatprep.subr.mxu0 0.0
    %582 = vmatpush2.msra.mxu0 0.0
    %583 = vmatprep.subr.mxu0 0.0
    %584 = vmatpush2.msra.mxu0 0.0
    %585 = vmatprep.subr.mxu0 0.0
    %586 = vmatpush2.msra.mxu0 0.0
    %587 = vmatprep.subr.mxu0 0.0
    %588 = vmatpush2.msra.mxu0 0.0
    %589 = vmatprep.subr.mxu0 0.0
    %590 = vmatpush2.msra.mxu0 0.0
    %591 = vmatprep.subr.mxu0 0.0
    %592 = vmatpush2.msra.mxu0 0.0
    %593 = vmatprep.subr.mxu0 0.0
    %594 = vmatpush2.msra.mxu0 0.0
    %595 = vmatprep.subr.mxu0 0.0
    %596 = vmatpush2.msra.mxu0 0.0
    %597 = vmatprep.mubr.f32.mxu0 0.0
    %598 = vmatmul.mubr.f32.gmra.mxu0 %v531
    %v599 = vpop.f32.mrf.mxu0
    %v600 = vadd.f32 0.0, %v599
    %v601 = vpop.f32.mrf.mxu0
    %602 = vdwg.mxu0
    %v603 = vadd.f32 %v527, %v600
    %v604 = vadd.f32 %v603, %v83
    %v605 = vmax.f32 %v604, 0.0
    %vm606 = vcmask 523264
    %v608 = vsel %vm606, %v605, 0
    %610 = vmatprep.subr.mxu0 0.0
    %611 = vmatpush1.msra.mxu0 0.0
    %612 = vmatprep.subr.mxu0 0.0
    %613 = vmatpush1.msra.mxu0 0.0
    %614 = vmatprep.subr.mxu0 0.0
    %615 = vmatpush1.msra.mxu0 0.0
    %616 = vmatprep.subr.mxu0 0.0
    %617 = vmatpush1.msra.mxu0 0.0
    %618 = vmatprep.subr.mxu0 0.0
    %619 = vmatpush1.msra.mxu0 0.0
    %620 = vmatprep.subr.mxu0 0.0
    %621 = vmatpush1.msra.mxu0 0.0
    %622 = vmatprep.subr.mxu0 0.0
    %623 = vmatpush1.msra.mxu0 0.0
    %624 = vmatprep.subr.mxu0 0.0
    %625 = vmatpush1.msra.mxu0 0.0
    %626 = vmatprep.subr.mxu0 0.0
    %627 = vmatpush1.msra.mxu0 %v73
    %628 = vmatprep.subr.mxu0 0.0
    %629 = vmatpush1.msra.mxu0 %v72
    %630 = vmatprep.subr.mxu0 0.0
    %631 = vmatpush1.msra.mxu0 %v71
    %632 = vmatprep.subr.mxu0 0.0
    %633 = vmatpush1.msra.mxu0 %v70
    %634 = vmatprep.subr.mxu0 0.0
    %635 = vmatpush1.msra.mxu0 %v69
    %636 = vmatprep.subr.mxu0 0.0
    %637 = vmatpush1.msra.mxu0 %v68
    %638 = vmatprep.subr.mxu0 0.0
    %639 = vmatpush1.msra.mxu0 %v67
    %640 = vmatprep.subr.mxu0 0.0
    %641 = vmatpush1.msra.mxu0 %v66
    %642 = vmatprep.subr.mxu0 0.0
    %643 = vmatpush2.msra.mxu0 0.0
    %644 = vmatprep.subr.mxu0 0.0
    %645 = vmatpush2.msra.mxu0 0.0
    %646 = vmatprep.subr.mxu0 0.0
    %647 = vmatpush2.msra.mxu0 0.0
    %648 = vmatprep.subr.mxu0 0.0
    %649 = vmatpush2.msra.mxu0 0.0
    %650 = vmatprep.subr.mxu0 0.0
    %651 = vmatpush2.msra.mxu0 0.0
    %652 = vmatprep.subr.mxu0 0.0
    %653 = vmatpush2.msra.mxu0 0.0
    %654 = vmatprep.subr.mxu0 0.0
    %655 = vmatpush2.msra.mxu0 0.0
    %656 = vmatprep.subr.mxu0 0.0
    %657 = vmatpush2.msra.mxu0 0.0
    %658 = vmatprep.subr.mxu0 0.0
    %659 = vmatpush2.msra.mxu0 0.0
    %660 = vmatprep.subr.mxu0 0.0
    %661 = vmatpush2.msra.mxu0 0.0
    %662 = vmatprep.subr.mxu0 0.0
    %663 = vmatpush2.msra.mxu0 0.0
    %664 = vmatprep.subr.mxu0 0.0
    %665 = vmatpush2.msra.mxu0 0.0
    %666 = vmatprep.subr.mxu0 0.0
    %667 = vmatpush2.msra.mxu0 0.0
    %668 = vmatprep.subr.mxu0 0.0
    %669 = vmatpush2.msra.mxu0 0.0
    %670 = vmatprep.subr.mxu0 0.0
    %671 = vmatpush2.msra.mxu0 0.0
    %672 = vmatprep.subr.mxu0 0.0
    %673 = vmatpush2.msra.mxu0 0.0
    %674 = vmatprep.mubr.f32.mxu0 0.0
    %675 = vmatmul.mubr.f32.gmra.mxu0 %v608
    %v676 = vpop.f32.mrf.mxu0
    %v677 = vadd.f32 %v84, %v676
    %v678 = vpop.f32.mrf.mxu0
    %679 = vdwg.mxu0
    %v680 = vmax.f32 %v677, 0.0
    %v682 = vsel %vm606, %v680, 0
    %684 = vmatprep.subr.mxu0 0.0
    %685 = vmatpush1.msra.mxu0 0.0
    %686 = vmatprep.subr.mxu0 0.0
    %687 = vmatpush1.msra.mxu0 0.0
    %688 = vmatprep.subr.mxu0 0.0
    %689 = vmatpush1.msra.mxu0 0.0
    %690 = vmatprep.subr.mxu0 0.0
    %691 = vmatpush1.msra.mxu0 0.0
    %692 = vmatprep.subr.mxu0 0.0
    %693 = vmatpush1.msra.mxu0 0.0
    %694 = vmatprep.subr.mxu0 0.0
    %695 = vmatpush1.msra.mxu0 0.0
    %696 = vmatprep.subr.mxu0 0.0
    %697 = vmatpush1.msra.mxu0 0.0
    %698 = vmatprep.subr.mxu0 0.0
    %699 = vmatpush1.msra.mxu0 0.0
    %700 = vmatprep.subr.mxu0 0.0
    %701 = vmatpush1.msra.mxu0 %v81
    %702 = vmatprep.subr.mxu0 0.0
    %703 = vmatpush1.msra.mxu0 %v80
    %704 = vmatprep.subr.mxu0 0.0
    %705 = vmatpush1.msra.mxu0 %v79
    %706 = vmatprep.subr.mxu0 0.0
    %707 = vmatpush1.msra.mxu0 %v78
    %708 = vmatprep.subr.mxu0 0.0
    %709 = vmatpush1.msra.mxu0 %v77
    %710 = vmatprep.subr.mxu0 0.0
    %711 = vmatpush1.msra.mxu0 %v76
    %712 = vmatprep.subr.mxu0 0.0
    %713 = vmatpush1.msra.mxu0 %v75
    %714 = vmatprep.subr.mxu0 0.0
    %715 = vmatpush1.msra.mxu0 %v74
    %716 = vmatprep.subr.mxu0 0.0
    %717 = vmatpush2.msra.mxu0 0.0
    %718 = vmatprep.subr.mxu0 0.0
    %719 = vmatpush2.msra.mxu0 0.0
    %720 = vmatprep.subr.mxu0 0.0
    %721 = vmatpush2.msra.mxu0 0.0
    %722 = vmatprep.subr.mxu0 0.0
    %723 = vmatpush2.msra.mxu0 0.0
    %724 = vmatprep.subr.mxu0 0.0
    %725 = vmatpush2.msra.mxu0 0.0
    %726 = vmatprep.subr.mxu0 0.0
    %727 = vmatpush2.msra.mxu0 0.0
    %728 = vmatprep.subr.mxu0 0.0
    %729 = vmatpush2.msra.mxu0 0.0
    %730 = vmatprep.subr.mxu0 0.0
    %731 = vmatpush2.msra.mxu0 0.0
    %732 = vmatprep.subr.mxu0 0.0
    %733 = vmatpush2.msra.mxu0 0.0
    %734 = vmatprep.subr.mxu0 0.0
    %735 = vmatpush2.msra.mxu0 0.0
    %736 = vmatprep.subr.mxu0 0.0
    %737 = vmatpush2.msra.mxu0 0.0
    %738 = vmatprep.subr.mxu0 0.0
    %739 = vmatpush2.msra.mxu0 0.0
    %740 = vmatprep.subr.mxu0 0.0
    %741 = vmatpush2.msra.mxu0 0.0
    %742 = vmatprep.subr.mxu0 0.0
    %743 = vmatpush2.msra.mxu0 0.0
    %744 = vmatprep.subr.mxu0 0.0
    %745 = vmatpush2.msra.mxu0 0.0
    %746 = vmatprep.subr.mxu0 0.0
    %747 = vmatpush2.msra.mxu0 0.0
    %748 = vmatprep.mubr.f32.mxu0 0.0
    %749 = vmatmul.mubr.f32.gmra.mxu0 %v682
    %v750 = vpop.f32.mrf.mxu0
    %v751 = vadd.f32 %v85, %v750
    %v752 = vpop.f32.mrf.mxu0
    %753 = vdwg.mxu0
    %vm754 = vcmask 24576
    %755 = vst.msk [vmem:[#allocation2] sm:$0x1] %vm754, %v751
    %s756 = scalar_lea.vmem %s0, 24
    %v757 = vld [vmem:[%s756] sm:$0xff]
    %v758 = vld [vmem:[%s756 + $0x8] sm:$0xff]
    %v759 = vld [vmem:[%s756 + $0x10] sm:$0xf]
    %760 = vmatprep.subr.mxu0 0.0
    %761 = vmatpush1.msra.mxu0 %v27
    %762 = vmatprep.subr.mxu0 0.0
    %763 = vmatpush1.msra.mxu0 %v26
    %764 = vmatprep.subr.mxu0 0.0
    %765 = vmatpush1.msra.mxu0 %v25
    %766 = vmatprep.subr.mxu0 0.0
    %767 = vmatpush1.msra.mxu0 %v24
    %768 = vmatprep.subr.mxu0 0.0
    %769 = vmatpush1.msra.mxu0 %v23
    %770 = vmatprep.subr.mxu0 0.0
    %771 = vmatpush1.msra.mxu0 %v22
    %772 = vmatprep.subr.mxu0 0.0
    %773 = vmatpush1.msra.mxu0 %v21
    %774 = vmatprep.subr.mxu0 0.0
    %775 = vmatpush1.msra.mxu0 %v20
    %776 = vmatprep.subr.mxu0 0.0
    %777 = vmatpush1.msra.mxu0 %v19
    %778 = vmatprep.subr.mxu0 0.0
    %779 = vmatpush1.msra.mxu0 %v18
    %780 = vmatprep.subr.mxu0 0.0
    %781 = vmatpush1.msra.mxu0 %v17
    %782 = vmatprep.subr.mxu0 0.0
    %783 = vmatpush1.msra.mxu0 %v16
    %784 = vmatprep.subr.mxu0 0.0
    %785 = vmatpush1.msra.mxu0 %v15
    %786 = vmatprep.subr.mxu0 0.0
    %787 = vmatpush1.msra.mxu0 %v14
    %788 = vmatprep.subr.mxu0 0.0
    %789 = vmatpush1.msra.mxu0 %v13
    %790 = vmatprep.subr.mxu0 0.0
    %791 = vmatpush1.msra.mxu0 %v12
    %792 = vmatprep.subr.mxu0 0.0
    %793 = vmatpush2.msra.mxu0 0.0
    %794 = vmatprep.subr.mxu0 0.0
    %795 = vmatpush2.msra.mxu0 0.0
    %796 = vmatprep.subr.mxu0 0.0
    %797 = vmatpush2.msra.mxu0 0.0
    %798 = vmatprep.subr.mxu0 0.0
    %799 = vmatpush2.msra.mxu0 0.0
    %800 = vmatprep.subr.mxu0 0.0
    %801 = vmatpush2.msra.mxu0 0.0
    %802 = vmatprep.subr.mxu0 0.0
    %803 = vmatpush2.msra.mxu0 0.0
    %804 = vmatprep.subr.mxu0 0.0
    %805 = vmatpush2.msra.mxu0 0.0
    %806 = vmatprep.subr.mxu0 0.0
    %807 = vmatpush2.msra.mxu0 0.0
    %808 = vmatprep.subr.mxu0 0.0
    %809 = vmatpush2.msra.mxu0 0.0
    %810 = vmatprep.subr.mxu0 0.0
    %811 = vmatpush2.msra.mxu0 0.0
    %812 = vmatprep.subr.mxu0 0.0
    %813 = vmatpush2.msra.mxu0 0.0
    %814 = vmatprep.subr.mxu0 0.0
    %815 = vmatpush2.msra.mxu0 0.0
    %816 = vmatprep.subr.mxu0 0.0
    %817 = vmatpush2.msra.mxu0 0.0
    %818 = vmatprep.subr.mxu0 0.0
    %819 = vmatpush2.msra.mxu0 0.0
    %820 = vmatprep.subr.mxu0 0.0
    %821 = vmatpush2.msra.mxu0 0.0
    %822 = vmatprep.subr.mxu0 0.0
    %823 = vmatpush2.msra.mxu0 0.0
    %824 = vmatprep.mubr.f32.mxu0 0.0
    %825 = vmatmul.mubr.f32.gmra.mxu0 %v757
    %v826 = vpop.f32.mrf.mxu0
    %v827 = vadd.f32 0.0, %v826
    %v828 = vpop.f32.mrf.mxu0
    %829 = vmatprep.mubr.f32.mxu0 0.0
    %830 = vmatmul.mubr.f32.gmra.mxu0 %v758
    %v831 = vpop.f32.mrf.mxu0
    %v832 = vadd.f32 0.0, %v831
    %v833 = vpop.f32.mrf.mxu0
    %834 = vmatprep.mubr.f32.mxu0 0.0
    %835 = vmatmul.mubr.f32.gmra.mxu0 %v759
    %v836 = vpop.f32.mrf.mxu0
    %v837 = vadd.f32 0.0, %v836
    %v838 = vpop.f32.mrf.mxu0
    %839 = vdwg.mxu0
    %840 = vmatprep.subr.mxu0 0.0
    %841 = vmatpush1.msra.mxu0 %v43
    %842 = vmatprep.subr.mxu0 0.0
    %843 = vmatpush1.msra.mxu0 %v42
    %844 = vmatprep.subr.mxu0 0.0
    %845 = vmatpush1.msra.mxu0 %v41
    %846 = vmatprep.subr.mxu0 0.0
    %847 = vmatpush1.msra.mxu0 %v40
    %848 = vmatprep.subr.mxu0 0.0
    %849 = vmatpush1.msra.mxu0 %v39
    %850 = vmatprep.subr.mxu0 0.0
    %851 = vmatpush1.msra.mxu0 %v38
    %852 = vmatprep.subr.mxu0 0.0
    %853 = vmatpush1.msra.mxu0 %v37
    %854 = vmatprep.subr.mxu0 0.0
    %855 = vmatpush1.msra.mxu0 %v36
    %856 = vmatprep.subr.mxu0 0.0
    %857 = vmatpush1.msra.mxu0 %v35
    %858 = vmatprep.subr.mxu0 0.0
    %859 = vmatpush1.msra.mxu0 %v34
    %860 = vmatprep.subr.mxu0 0.0
    %861 = vmatpush1.msra.mxu0 %v33
    %862 = vmatprep.subr.mxu0 0.0
    %863 = vmatpush1.msra.mxu0 %v32
    %864 = vmatprep.subr.mxu0 0.0
    %865 = vmatpush1.msra.mxu0 %v31
    %866 = vmatprep.subr.mxu0 0.0
    %867 = vmatpush1.msra.mxu0 %v30
    %868 = vmatprep.subr.mxu0 0.0
    %869 = vmatpush1.msra.mxu0 %v29
    %870 = vmatprep.subr.mxu0 0.0
    %871 = vmatpush1.msra.mxu0 %v28
    %872 = vmatprep.subr.mxu0 0.0
    %873 = vmatpush2.msra.mxu0 0.0
    %874 = vmatprep.subr.mxu0 0.0
    %875 = vmatpush2.msra.mxu0 0.0
    %876 = vmatprep.subr.mxu0 0.0
    %877 = vmatpush2.msra.mxu0 0.0
    %878 = vmatprep.subr.mxu0 0.0
    %879 = vmatpush2.msra.mxu0 0.0
    %880 = vmatprep.subr.mxu0 0.0
    %881 = vmatpush2.msra.mxu0 0.0
    %882 = vmatprep.subr.mxu0 0.0
    %883 = vmatpush2.msra.mxu0 0.0
    %884 = vmatprep.subr.mxu0 0.0
    %885 = vmatpush2.msra.mxu0 0.0
    %886 = vmatprep.subr.mxu0 0.0
    %887 = vmatpush2.msra.mxu0 0.0
    %888 = vmatprep.subr.mxu0 0.0
    %889 = vmatpush2.msra.mxu0 0.0
    %890 = vmatprep.subr.mxu0 0.0
    %891 = vmatpush2.msra.mxu0 0.0
    %892 = vmatprep.subr.mxu0 0.0
    %893 = vmatpush2.msra.mxu0 0.0
    %894 = vmatprep.subr.mxu0 0.0
    %895 = vmatpush2.msra.mxu0 0.0
    %896 = vmatprep.subr.mxu0 0.0
    %897 = vmatpush2.msra.mxu0 0.0
    %898 = vmatprep.subr.mxu0 0.0
    %899 = vmatpush2.msra.mxu0 0.0
    %900 = vmatprep.subr.mxu0 0.0
    %901 = vmatpush2.msra.mxu0 0.0
    %902 = vmatprep.subr.mxu0 0.0
    %903 = vmatpush2.msra.mxu0 0.0
    %904 = vmatprep.mubr.f32.mxu0 0.0
    %905 = vmatmul.mubr.f32.gmra.mxu0 %v757
    %v906 = vpop.f32.mrf.mxu0
    %v907 = vadd.f32 0.0, %v906
    %v908 = vpop.f32.mrf.mxu0
    %909 = vmatprep.mubr.f32.mxu0 0.0
    %910 = vmatmul.mubr.f32.gmra.mxu0 %v758
    %v911 = vpop.f32.mrf.mxu0
    %v912 = vadd.f32 0.0, %v911
    %v913 = vpop.f32.mrf.mxu0
    %914 = vmatprep.mubr.f32.mxu0 0.0
    %915 = vmatmul.mubr.f32.gmra.mxu0 %v759
    %v916 = vpop.f32.mrf.mxu0
    %v917 = vadd.f32 0.0, %v916
    %v918 = vpop.f32.mrf.mxu0
    %919 = vdwg.mxu0
    %920 = vmatprep.subr.mxu0 0.0
    %921 = vmatpush1.msra.mxu0 %v59
    %922 = vmatprep.subr.mxu0 0.0
    %923 = vmatpush1.msra.mxu0 %v58
    %924 = vmatprep.subr.mxu0 0.0
    %925 = vmatpush1.msra.mxu0 %v57
    %926 = vmatprep.subr.mxu0 0.0
    %927 = vmatpush1.msra.mxu0 %v56
    %928 = vmatprep.subr.mxu0 0.0
    %929 = vmatpush1.msra.mxu0 %v55
    %930 = vmatprep.subr.mxu0 0.0
    %931 = vmatpush1.msra.mxu0 %v54
    %932 = vmatprep.subr.mxu0 0.0
    %933 = vmatpush1.msra.mxu0 %v53
    %934 = vmatprep.subr.mxu0 0.0
    %935 = vmatpush1.msra.mxu0 %v52
    %936 = vmatprep.subr.mxu0 0.0
    %937 = vmatpush1.msra.mxu0 %v51
    %938 = vmatprep.subr.mxu0 0.0
    %939 = vmatpush1.msra.mxu0 %v50
    %940 = vmatprep.subr.mxu0 0.0
    %941 = vmatpush1.msra.mxu0 %v49
    %942 = vmatprep.subr.mxu0 0.0
    %943 = vmatpush1.msra.mxu0 %v48
    %944 = vmatprep.subr.mxu0 0.0
    %945 = vmatpush1.msra.mxu0 %v47
    %946 = vmatprep.subr.mxu0 0.0
    %947 = vmatpush1.msra.mxu0 %v46
    %948 = vmatprep.subr.mxu0 0.0
    %949 = vmatpush1.msra.mxu0 %v45
    %950 = vmatprep.subr.mxu0 0.0
    %951 = vmatpush1.msra.mxu0 %v44
    %952 = vmatprep.subr.mxu0 0.0
    %953 = vmatpush2.msra.mxu0 0.0
    %954 = vmatprep.subr.mxu0 0.0
    %955 = vmatpush2.msra.mxu0 0.0
    %956 = vmatprep.subr.mxu0 0.0
    %957 = vmatpush2.msra.mxu0 0.0
    %958 = vmatprep.subr.mxu0 0.0
    %959 = vmatpush2.msra.mxu0 0.0
    %960 = vmatprep.subr.mxu0 0.0
    %961 = vmatpush2.msra.mxu0 0.0
    %962 = vmatprep.subr.mxu0 0.0
    %963 = vmatpush2.msra.mxu0 0.0
    %964 = vmatprep.subr.mxu0 0.0
    %965 = vmatpush2.msra.mxu0 0.0
    %966 = vmatprep.subr.mxu0 0.0
    %967 = vmatpush2.msra.mxu0 0.0
    %968 = vmatprep.subr.mxu0 0.0
    %969 = vmatpush2.msra.mxu0 0.0
    %970 = vmatprep.subr.mxu0 0.0
    %971 = vmatpush2.msra.mxu0 0.0
    %972 = vmatprep.subr.mxu0 0.0
    %973 = vmatpush2.msra.mxu0 0.0
    %974 = vmatprep.subr.mxu0 0.0
    %975 = vmatpush2.msra.mxu0 0.0
    %976 = vmatprep.subr.mxu0 0.0
    %977 = vmatpush2.msra.mxu0 0.0
    %978 = vmatprep.subr.mxu0 0.0
    %979 = vmatpush2.msra.mxu0 0.0
    %980 = vmatprep.subr.mxu0 0.0
    %981 = vmatpush2.msra.mxu0 0.0
    %982 = vmatprep.subr.mxu0 0.0
    %983 = vmatpush2.msra.mxu0 0.0
    %984 = vmatprep.mubr.f32.mxu0 0.0
    %985 = vmatmul.mubr.f32.gmra.mxu0 %v757
    %v986 = vpop.f32.mrf.mxu0
    %v987 = vadd.f32 0.0, %v986
    %v988 = vpop.f32.mrf.mxu0
    %989 = vmatprep.mubr.f32.mxu0 0.0
    %990 = vmatmul.mubr.f32.gmra.mxu0 %v758
    %v991 = vpop.f32.mrf.mxu0
    %v992 = vadd.f32 0.0, %v991
    %v993 = vpop.f32.mrf.mxu0
    %994 = vmatprep.mubr.f32.mxu0 0.0
    %995 = vmatmul.mubr.f32.gmra.mxu0 %v759
    %v996 = vpop.f32.mrf.mxu0
    %v997 = vadd.f32 0.0, %v996
    %v998 = vpop.f32.mrf.mxu0
    %999 = vdwg.mxu0
    %v1003 = vrot.slane %v907, 1
    %v1004 = vrot.slane %v912, 1
    %v1005 = vsel %vm332, %v1003, %v1004
    %v1006 = vrot.slane %v917, 1
    %v1007 = vsel %vm332, %v1004, %v1006
    %v1011 = vadd.f32 %v827, %v1005
    %v1012 = vadd.f32 %v832, %v1007
    %v1013 = vadd.f32 %v837, %v1006
    %v1017 = vrot.slane %v987, 2
    %v1018 = vrot.slane %v992, 2
    %v1019 = vsel %vm347, %v1017, %v1018
    %v1020 = vrot.slane %v997, 2
    %v1021 = vsel %vm347, %v1018, %v1020
    %v1025 = vadd.f32 %v1011, %v1019
    %v1026 = vadd.f32 %v1012, %v1021
    %v1027 = vadd.f32 %v1013, %v1020
    %v1028 = vadd.f32 %v1025, %v362
    %v1029 = vadd.f32 %v1026, %v362
    %v1030 = vadd.f32 %v1027, %v362
    %v1031 = vmax.f32 %v1028, 0.0
    %v1032 = vmax.f32 %v1029, 0.0
    %v1033 = vmax.f32 %v1030, 0.0
    %v1034 = vsel %vm369, %v1031, -inf
    %v1035 = vsel %vm369, %v1032, -inf
    %v1036 = vmax.f32 %v1034, %v1035
    %v1037 = vrot.slane %v1036, 4
    %v1038 = vmax.f32 %v1036, %v1037
    %v1039 = vrot.slane %v1038, 2
    %v1040 = vmax.f32 %v1038, %v1039
    %v1041 = vrot.slane %v1040, 1
    %v1042 = vmax.f32 %v1040, %v1041
    %v1043 = vmax.f32 %v1042, %v1033
    %v1045 = vrot.slane %v1033, 1
    %v1047 = vmax.f32 %v1043, %v1045
    %v1049 = vsel %vm369, %v1043, 0
    %1051 = vmatprep.subr.mxu0 0.0
    %1052 = vmatpush1.msra.mxu0 0.0
    %1053 = vmatprep.subr.mxu0 0.0
    %1054 = vmatpush1.msra.mxu0 0.0
    %1055 = vmatprep.subr.mxu0 0.0
    %1056 = vmatpush1.msra.mxu0 0.0
    %1057 = vmatprep.subr.mxu0 0.0
    %1058 = vmatpush1.msra.mxu0 0.0
    %1059 = vmatprep.subr.mxu0 0.0
    %1060 = vmatpush1.msra.mxu0 0.0
    %1061 = vmatprep.subr.mxu0 0.0
    %1062 = vmatpush1.msra.mxu0 0.0
    %1063 = vmatprep.subr.mxu0 0.0
    %1064 = vmatpush1.msra.mxu0 0.0
    %1065 = vmatprep.subr.mxu0 0.0
    %1066 = vmatpush1.msra.mxu0 0.0
    %1067 = vmatprep.subr.mxu0 0.0
    %1068 = vmatpush1.msra.mxu0 0.0
    %1069 = vmatprep.subr.mxu0 0.0
    %1070 = vmatpush1.msra.mxu0 0.0
    %1071 = vmatprep.subr.mxu0 0.0
    %1072 = vmatpush1.msra.mxu0 0.0
    %1073 = vmatprep.subr.mxu0 0.0
    %1074 = vmatpush1.msra.mxu0 0.0
    %1075 = vmatprep.subr.mxu0 0.0
    %1076 = vmatpush1.msra.mxu0 0.0
    %1077 = vmatprep.subr.mxu0 0.0
    %1078 = vmatpush1.msra.mxu0 0.0
    %1079 = vmatprep.subr.mxu0 0.0
    %1080 = vmatpush1.msra.mxu0 %v63
    %1081 = vmatprep.subr.mxu0 0.0
    %1082 = vmatpush1.msra.mxu0 %v62
    %1083 = vmatprep.subr.mxu0 0.0
    %1084 = vmatpush2.msra.mxu0 0.0
    %1085 = vmatprep.subr.mxu0 0.0
    %1086 = vmatpush2.msra.mxu0 0.0
    %1087 = vmatprep.subr.mxu0 0.0
    %1088 = vmatpush2.msra.mxu0 0.0
    %1089 = vmatprep.subr.mxu0 0.0
    %1090 = vmatpush2.msra.mxu0 0.0
    %1091 = vmatprep.subr.mxu0 0.0
    %1092 = vmatpush2.msra.mxu0 0.0
    %1093 = vmatprep.subr.mxu0 0.0
    %1094 = vmatpush2.msra.mxu0 0.0
    %1095 = vmatprep.subr.mxu0 0.0
    %1096 = vmatpush2.msra.mxu0 0.0
    %1097 = vmatprep.subr.mxu0 0.0
    %1098 = vmatpush2.msra.mxu0 0.0
    %1099 = vmatprep.subr.mxu0 0.0
    %1100 = vmatpush2.msra.mxu0 0.0
    %1101 = vmatprep.subr.mxu0 0.0
    %1102 = vmatpush2.msra.mxu0 0.0
    %1103 = vmatprep.subr.mxu0 0.0
    %1104 = vmatpush2.msra.mxu0 0.0
    %1105 = vmatprep.subr.mxu0 0.0
    %1106 = vmatpush2.msra.mxu0 0.0
    %1107 = vmatprep.subr.mxu0 0.0
    %1108 = vmatpush2.msra.mxu0 0.0
    %1109 = vmatprep.subr.mxu0 0.0
    %1110 = vmatpush2.msra.mxu0 0.0
    %1111 = vmatprep.subr.mxu0 0.0
    %1112 = vmatpush2.msra.mxu0 0.0
    %1113 = vmatprep.subr.mxu0 0.0
    %1114 = vmatpush2.msra.mxu0 0.0
    %1115 = vmatprep.mubr.f32.mxu0 0.0
    %1116 = vmatmul.mubr.f32.gmra.mxu0 %v1049
    %v1117 = vpop.f32.mrf.mxu0
    %v1118 = vadd.f32 0.0, %v1117
    %v1119 = vpop.f32.mrf.mxu0
    %1120 = vdwg.mxu0
    %v1122 = vsel %vm369, %v1047, 0
    %1124 = vmatprep.subr.mxu0 0.0
    %1125 = vmatpush1.msra.mxu0 0.0
    %1126 = vmatprep.subr.mxu0 0.0
    %1127 = vmatpush1.msra.mxu0 0.0
    %1128 = vmatprep.subr.mxu0 0.0
    %1129 = vmatpush1.msra.mxu0 0.0
    %1130 = vmatprep.subr.mxu0 0.0
    %1131 = vmatpush1.msra.mxu0 0.0
    %1132 = vmatprep.subr.mxu0 0.0
    %1133 = vmatpush1.msra.mxu0 0.0
    %1134 = vmatprep.subr.mxu0 0.0
    %1135 = vmatpush1.msra.mxu0 0.0
    %1136 = vmatprep.subr.mxu0 0.0
    %1137 = vmatpush1.msra.mxu0 0.0
    %1138 = vmatprep.subr.mxu0 0.0
    %1139 = vmatpush1.msra.mxu0 0.0
    %1140 = vmatprep.subr.mxu0 0.0
    %1141 = vmatpush1.msra.mxu0 0.0
    %1142 = vmatprep.subr.mxu0 0.0
    %1143 = vmatpush1.msra.mxu0 0.0
    %1144 = vmatprep.subr.mxu0 0.0
    %1145 = vmatpush1.msra.mxu0 0.0
    %1146 = vmatprep.subr.mxu0 0.0
    %1147 = vmatpush1.msra.mxu0 0.0
    %1148 = vmatprep.subr.mxu0 0.0
    %1149 = vmatpush1.msra.mxu0 0.0
    %1150 = vmatprep.subr.mxu0 0.0
    %1151 = vmatpush1.msra.mxu0 0.0
    %1152 = vmatprep.subr.mxu0 0.0
    %1153 = vmatpush1.msra.mxu0 %v61
    %1154 = vmatprep.subr.mxu0 0.0
    %1155 = vmatpush1.msra.mxu0 %v60
    %1156 = vmatprep.subr.mxu0 0.0
    %1157 = vmatpush2.msra.mxu0 0.0
    %1158 = vmatprep.subr.mxu0 0.0
    %1159 = vmatpush2.msra.mxu0 0.0
    %1160 = vmatprep.subr.mxu0 0.0
    %1161 = vmatpush2.msra.mxu0 0.0
    %1162 = vmatprep.subr.mxu0 0.0
    %1163 = vmatpush2.msra.mxu0 0.0
    %1164 = vmatprep.subr.mxu0 0.0
    %1165 = vmatpush2.msra.mxu0 0.0
    %1166 = vmatprep.subr.mxu0 0.0
    %1167 = vmatpush2.msra.mxu0 0.0
    %1168 = vmatprep.subr.mxu0 0.0
    %1169 = vmatpush2.msra.mxu0 0.0
    %1170 = vmatprep.subr.mxu0 0.0
    %1171 = vmatpush2.msra.mxu0 0.0
    %1172 = vmatprep.subr.mxu0 0.0
    %1173 = vmatpush2.msra.mxu0 0.0
    %1174 = vmatprep.subr.mxu0 0.0
    %1175 = vmatpush2.msra.mxu0 0.0
    %1176 = vmatprep.subr.mxu0 0.0
    %1177 = vmatpush2.msra.mxu0 0.0
    %1178 = vmatprep.subr.mxu0 0.0
    %1179 = vmatpush2.msra.mxu0 0.0
    %1180 = vmatprep.subr.mxu0 0.0
    %1181 = vmatpush2.msra.mxu0 0.0
    %1182 = vmatprep.subr.mxu0 0.0
    %1183 = vmatpush2.msra.mxu0 0.0
    %1184 = vmatprep.subr.mxu0 0.0
    %1185 = vmatpush2.msra.mxu0 0.0
    %1186 = vmatprep.subr.mxu0 0.0
    %1187 = vmatpush2.msra.mxu0 0.0
    %1188 = vmatprep.mubr.f32.mxu0 0.0
    %1189 = vmatmul.mubr.f32.gmra.mxu0 %v1122
    %v1190 = vpop.f32.mrf.mxu0
    %v1191 = vadd.f32 %v1118, %v1190
    %v1192 = vpop.f32.mrf.mxu0
    %1193 = vdwg.mxu0
    %v1195 = vsel %vm369, %v1042, 0
    %1197 = vmatprep.subr.mxu0 0.0
    %1198 = vmatpush1.msra.mxu0 0.0
    %1199 = vmatprep.subr.mxu0 0.0
    %1200 = vmatpush1.msra.mxu0 0.0
    %1201 = vmatprep.subr.mxu0 0.0
    %1202 = vmatpush1.msra.mxu0 0.0
    %1203 = vmatprep.subr.mxu0 0.0
    %1204 = vmatpush1.msra.mxu0 0.0
    %1205 = vmatprep.subr.mxu0 0.0
    %1206 = vmatpush1.msra.mxu0 0.0
    %1207 = vmatprep.subr.mxu0 0.0
    %1208 = vmatpush1.msra.mxu0 0.0
    %1209 = vmatprep.subr.mxu0 0.0
    %1210 = vmatpush1.msra.mxu0 0.0
    %1211 = vmatprep.subr.mxu0 0.0
    %1212 = vmatpush1.msra.mxu0 0.0
    %1213 = vmatprep.subr.mxu0 0.0
    %1214 = vmatpush1.msra.mxu0 0.0
    %1215 = vmatprep.subr.mxu0 0.0
    %1216 = vmatpush1.msra.mxu0 0.0
    %1217 = vmatprep.subr.mxu0 0.0
    %1218 = vmatpush1.msra.mxu0 0.0
    %1219 = vmatprep.subr.mxu0 0.0
    %1220 = vmatpush1.msra.mxu0 0.0
    %1221 = vmatprep.subr.mxu0 0.0
    %1222 = vmatpush1.msra.mxu0 0.0
    %1223 = vmatprep.subr.mxu0 0.0
    %1224 = vmatpush1.msra.mxu0 0.0
    %1225 = vmatprep.subr.mxu0 0.0
    %1226 = vmatpush1.msra.mxu0 %v65
    %1227 = vmatprep.subr.mxu0 0.0
    %1228 = vmatpush1.msra.mxu0 %v64
    %1229 = vmatprep.subr.mxu0 0.0
    %1230 = vmatpush2.msra.mxu0 0.0
    %1231 = vmatprep.subr.mxu0 0.0
    %1232 = vmatpush2.msra.mxu0 0.0
    %1233 = vmatprep.subr.mxu0 0.0
    %1234 = vmatpush2.msra.mxu0 0.0
    %1235 = vmatprep.subr.mxu0 0.0
    %1236 = vmatpush2.msra.mxu0 0.0
    %1237 = vmatprep.subr.mxu0 0.0
    %1238 = vmatpush2.msra.mxu0 0.0
    %1239 = vmatprep.subr.mxu0 0.0
    %1240 = vmatpush2.msra.mxu0 0.0
    %1241 = vmatprep.subr.mxu0 0.0
    %1242 = vmatpush2.msra.mxu0 0.0
    %1243 = vmatprep.subr.mxu0 0.0
    %1244 = vmatpush2.msra.mxu0 0.0
    %1245 = vmatprep.subr.mxu0 0.0
    %1246 = vmatpush2.msra.mxu0 0.0
    %1247 = vmatprep.subr.mxu0 0.0
    %1248 = vmatpush2.msra.mxu0 0.0
    %1249 = vmatprep.subr.mxu0 0.0
    %1250 = vmatpush2.msra.mxu0 0.0
    %1251 = vmatprep.subr.mxu0 0.0
    %1252 = vmatpush2.msra.mxu0 0.0
    %1253 = vmatprep.subr.mxu0 0.0
    %1254 = vmatpush2.msra.mxu0 0.0
    %1255 = vmatprep.subr.mxu0 0.0
    %1256 = vmatpush2.msra.mxu0 0.0
    %1257 = vmatprep.subr.mxu0 0.0
    %1258 = vmatpush2.msra.mxu0 0.0
    %1259 = vmatprep.subr.mxu0 0.0
    %1260 = vmatpush2.msra.mxu0 0.0
    %1261 = vmatprep.mubr.f32.mxu0 0.0
    %1262 = vmatmul.mubr.f32.gmra.mxu0 %v1195
    %v1263 = vpop.f32.mrf.mxu0
    %v1264 = vadd.f32 0.0, %v1263
    %v1265 = vpop.f32.mrf.mxu0
    %1266 = vdwg.mxu0
    %v1267 = vadd.f32 %v1191, %v1264
    %v1268 = vadd.f32 %v1267, %v83
    %v1269 = vmax.f32 %v1268, 0.0
    %v1271 = vsel %vm606, %v1269, 0
    %1273 = vmatprep.subr.mxu0 0.0
    %1274 = vmatpush1.msra.mxu0 0.0
    %1275 = vmatprep.subr.mxu0 0.0
    %1276 = vmatpush1.msra.mxu0 0.0
    %1277 = vmatprep.subr.mxu0 0.0
    %1278 = vmatpush1.msra.mxu0 0.0
    %1279 = vmatprep.subr.mxu0 0.0
    %1280 = vmatpush1.msra.mxu0 0.0
    %1281 = vmatprep.subr.mxu0 0.0
    %1282 = vmatpush1.msra.mxu0 0.0
    %1283 = vmatprep.subr.mxu0 0.0
    %1284 = vmatpush1.msra.mxu0 0.0
    %1285 = vmatprep.subr.mxu0 0.0
    %1286 = vmatpush1.msra.mxu0 0.0
    %1287 = vmatprep.subr.mxu0 0.0
    %1288 = vmatpush1.msra.mxu0 0.0
    %1289 = vmatprep.subr.mxu0 0.0
    %1290 = vmatpush1.msra.mxu0 %v73
    %1291 = vmatprep.subr.mxu0 0.0
    %1292 = vmatpush1.msra.mxu0 %v72
    %1293 = vmatprep.subr.mxu0 0.0
    %1294 = vmatpush1.msra.mxu0 %v71
    %1295 = vmatprep.subr.mxu0 0.0
    %1296 = vmatpush1.msra.mxu0 %v70
    %1297 = vmatprep.subr.mxu0 0.0
    %1298 = vmatpush1.msra.mxu0 %v69
    %1299 = vmatprep.subr.mxu0 0.0
    %1300 = vmatpush1.msra.mxu0 %v68
    %1301 = vmatprep.subr.mxu0 0.0
    %1302 = vmatpush1.msra.mxu0 %v67
    %1303 = vmatprep.subr.mxu0 0.0
    %1304 = vmatpush1.msra.mxu0 %v66
    %1305 = vmatprep.subr.mxu0 0.0
    %1306 = vmatpush2.msra.mxu0 0.0
    %1307 = vmatprep.subr.mxu0 0.0
    %1308 = vmatpush2.msra.mxu0 0.0
    %1309 = vmatprep.subr.mxu0 0.0
    %1310 = vmatpush2.msra.mxu0 0.0
    %1311 = vmatprep.subr.mxu0 0.0
    %1312 = vmatpush2.msra.mxu0 0.0
    %1313 = vmatprep.subr.mxu0 0.0
    %1314 = vmatpush2.msra.mxu0 0.0
    %1315 = vmatprep.subr.mxu0 0.0
    %1316 = vmatpush2.msra.mxu0 0.0
    %1317 = vmatprep.subr.mxu0 0.0
    %1318 = vmatpush2.msra.mxu0 0.0
    %1319 = vmatprep.subr.mxu0 0.0
    %1320 = vmatpush2.msra.mxu0 0.0
    %1321 = vmatprep.subr.mxu0 0.0
    %1322 = vmatpush2.msra.mxu0 0.0
    %1323 = vmatprep.subr.mxu0 0.0
    %1324 = vmatpush2.msra.mxu0 0.0
    %1325 = vmatprep.subr.mxu0 0.0
    %1326 = vmatpush2.msra.mxu0 0.0
    %1327 = vmatprep.subr.mxu0 0.0
    %1328 = vmatpush2.msra.mxu0 0.0
    %1329 = vmatprep.subr.mxu0 0.0
    %1330 = vmatpush2.msra.mxu0 0.0
    %1331 = vmatprep.subr.mxu0 0.0
    %1332 = vmatpush2.msra.mxu0 0.0
    %1333 = vmatprep.subr.mxu0 0.0
    %1334 = vmatpush2.msra.mxu0 0.0
    %1335 = vmatprep.subr.mxu0 0.0
    %1336 = vmatpush2.msra.mxu0 0.0
    %1337 = vmatprep.mubr.f32.mxu0 0.0
    %1338 = vmatmul.mubr.f32.gmra.mxu0 %v1271
    %v1339 = vpop.f32.mrf.mxu0
    %v1340 = vadd.f32 %v84, %v1339
    %v1341 = vpop.f32.mrf.mxu0
    %1342 = vdwg.mxu0
    %v1343 = vmax.f32 %v1340, 0.0
    %v1345 = vsel %vm606, %v1343, 0
    %1347 = vmatprep.subr.mxu0 0.0
    %1348 = vmatpush1.msra.mxu0 0.0
    %1349 = vmatprep.subr.mxu0 0.0
    %1350 = vmatpush1.msra.mxu0 0.0
    %1351 = vmatprep.subr.mxu0 0.0
    %1352 = vmatpush1.msra.mxu0 0.0
    %1353 = vmatprep.subr.mxu0 0.0
    %1354 = vmatpush1.msra.mxu0 0.0
    %1355 = vmatprep.subr.mxu0 0.0
    %1356 = vmatpush1.msra.mxu0 0.0
    %1357 = vmatprep.subr.mxu0 0.0
    %1358 = vmatpush1.msra.mxu0 0.0
    %1359 = vmatprep.subr.mxu0 0.0
    %1360 = vmatpush1.msra.mxu0 0.0
    %1361 = vmatprep.subr.mxu0 0.0
    %1362 = vmatpush1.msra.mxu0 0.0
    %1363 = vmatprep.subr.mxu0 0.0
    %1364 = vmatpush1.msra.mxu0 %v81
    %1365 = vmatprep.subr.mxu0 0.0
    %1366 = vmatpush1.msra.mxu0 %v80
    %1367 = vmatprep.subr.mxu0 0.0
    %1368 = vmatpush1.msra.mxu0 %v79
    %1369 = vmatprep.subr.mxu0 0.0
    %1370 = vmatpush1.msra.mxu0 %v78
    %1371 = vmatprep.subr.mxu0 0.0
    %1372 = vmatpush1.msra.mxu0 %v77
    %1373 = vmatprep.subr.mxu0 0.0
    %1374 = vmatpush1.msra.mxu0 %v76
    %1375 = vmatprep.subr.mxu0 0.0
    %1376 = vmatpush1.msra.mxu0 %v75
    %1377 = vmatprep.subr.mxu0 0.0
    %1378 = vmatpush1.msra.mxu0 %v74
    %1379 = vmatprep.subr.mxu0 0.0
    %1380 = vmatpush2.msra.mxu0 0.0
    %1381 = vmatprep.subr.mxu0 0.0
    %1382 = vmatpush2.msra.mxu0 0.0
    %1383 = vmatprep.subr.mxu0 0.0
    %1384 = vmatpush2.msra.mxu0 0.0
    %1385 = vmatprep.subr.mxu0 0.0
    %1386 = vmatpush2.msra.mxu0 0.0
    %1387 = vmatprep.subr.mxu0 0.0
    %1388 = vmatpush2.msra.mxu0 0.0
    %1389 = vmatprep.subr.mxu0 0.0
    %1390 = vmatpush2.msra.mxu0 0.0
    %1391 = vmatprep.subr.mxu0 0.0
    %1392 = vmatpush2.msra.mxu0 0.0
    %1393 = vmatprep.subr.mxu0 0.0
    %1394 = vmatpush2.msra.mxu0 0.0
    %1395 = vmatprep.subr.mxu0 0.0
    %1396 = vmatpush2.msra.mxu0 0.0
    %1397 = vmatprep.subr.mxu0 0.0
    %1398 = vmatpush2.msra.mxu0 0.0
    %1399 = vmatprep.subr.mxu0 0.0
    %1400 = vmatpush2.msra.mxu0 0.0
    %1401 = vmatprep.subr.mxu0 0.0
    %1402 = vmatpush2.msra.mxu0 0.0
    %1403 = vmatprep.subr.mxu0 0.0
    %1404 = vmatpush2.msra.mxu0 0.0
    %1405 = vmatprep.subr.mxu0 0.0
    %1406 = vmatpush2.msra.mxu0 0.0
    %1407 = vmatprep.subr.mxu0 0.0
    %1408 = vmatpush2.msra.mxu0 0.0
    %1409 = vmatprep.subr.mxu0 0.0
    %1410 = vmatpush2.msra.mxu0 0.0
    %1411 = vmatprep.mubr.f32.mxu0 0.0
    %1412 = vmatmul.mubr.f32.gmra.mxu0 %v1345
    %v1413 = vpop.f32.mrf.mxu0
    %v1414 = vadd.f32 %v85, %v1413
    %v1415 = vpop.f32.mrf.mxu0
    %1416 = vdwg.mxu0
    %1417 = vst.msk [vmem:[#allocation2 + $0x1] sm:$0x1] %vm754, %v1414
    // Predicated region
    $region10: #{textcnn_forward.1} parent=1 // pred_check
      _
    $region11: #{textcnn_forward.1} parent=1 // pred_check_branch
      %1419 = sbr.rel (0) target = $region13
    $region12: #{textcnn_forward.1} parent=1 // pred_region
      %s1421 = ssub.s32 32, 32
      %1422 = vsyncadd [#allocation3], %s1421
      %s1424 = sshll.u32 [#allocation2], 4
      %s1425 = int_to_ptr.vmem [resolvable:$true] %s1424
      %1427 = dma.vmem_to_hbm [thread:$0]  %s1425, 32, %s2, [#allocation3]
    $region13: #{textcnn_forward.1} parent=1 // pred_fallthru
      _
    // Predicated region
    $region14: #{textcnn_forward.1} parent=1 // pred_check
      _
    $region15: #{textcnn_forward.1} parent=1 // pred_check_branch
      %1429 = sbr.rel (0) target = $region17
    $region16: #{textcnn_forward.1} parent=1 // pred_region
      %1430 = dma.done [#allocation3], 32
    $region17: #{textcnn_forward.1} parent=1 // pred_fallthru
      _
    %1431 = vsyncpa [#allocation3], 1

</llo_original>
